<compile_context>
chip_gen: v7x
topology: tpu7x:2x2x1
jax: 0.10.0
libtpu: 0.0.40
codegen_flags: <defaults>
</compile_context>

<pallas_src>
import jax
import jax.numpy as jnp
from jax.experimental import pallas as pl
from jax.experimental.pallas import tpu as pltpu


# --------------------------- fused forward kernel ---------------------------
def _fused_kernel(x1_ref, x2_ref, state_ref, slab1_ref, slab2_ref, slabo_ref,
                  out_ref, state_o_ref):
    TB, I = x1_ref.shape
    _, B, H = state_ref.shape
    T = TB // B

    # ---- unpack packed state: [h_c1, h_c2, h_n1, h_n2] ----
    h_c1 = state_ref[0]
    h_c2 = state_ref[1]
    h_n1 = state_ref[2]
    h_n2 = state_ref[3]

    # ---- sublane-aligned slices of the weight slabs (I=32, I+H=96) ----
    w_ih1 = slab1_ref[0:I, :]
    w_hh1 = slab1_ref[I:I + H, :]
    b1 = slab1_ref[I + H:I + H + 1, :]
    w_ih2 = slab2_ref[0:I, :]
    w_hh2 = slab2_ref[I:I + H, :]
    b2 = slab2_ref[I + H:I + H + 1, :]
    w_out = slabo_ref[0:H, :]
    b_out = slabo_ref[H:H + 1, :]

    # ---- hoisted, time-batched input projections (one MXU call each) ----
    gx1 = jnp.dot(x1_ref[...], w_ih1,
                  preferred_element_type=jnp.float32) + b1          # (T*B, 4H)
    gx2 = jnp.dot(x2_ref[...], w_ih2,
                  preferred_element_type=jnp.float32) + b2          # (T*B, 4H)

    def run_lstm(gx, whh, h0, c0):
        h, c = h0, c0                       # (B, H), (B, H)
        hs = []                             # per-step hidden states (values)
        for t in range(T):                  # T small & static: full unroll
            gates = gx[t * B:(t + 1) * B, :] + jnp.dot(
                h, whh, preferred_element_type=jnp.float32)          # (B, 4H)
            i_g = jax.nn.sigmoid(gates[:, 0 * H:1 * H])
            f_g = jax.nn.sigmoid(gates[:, 1 * H:2 * H])
            g_g = jnp.tanh(gates[:, 2 * H:3 * H])
            o_g = jax.nn.sigmoid(gates[:, 3 * H:4 * H])
            c = f_g * c + i_g * g_g
            h = o_g * jnp.tanh(c)
            hs.append(h)
        return h, c, hs

    # lstm1: c0 = h_c1 + h_c2
    h1f, c1f, hs1 = run_lstm(gx1, w_hh1, h_n1, h_c1 + h_c2)
    # lstm2: c0 = (updated h_c1) + h_c2   (exactly as in the PyTorch forward)
    h2f, c2f, hs2 = run_lstm(gx2, w_hh2, h_n2, c1f + h_c2)

    # ---- fused output head: ((r1 + r2) / 2)[:, -1, :] @ W_out + b_out ----
    # r_out[:, -1, :] on a time-major (T,B,H) tensor selects the last *batch*
    # row per timestep (PyTorch-module quirk reproduced exactly).
    xh = jnp.concatenate(
        [(h1 + h2)[B - 1:B, :] for h1, h2 in zip(hs1, hs2)], axis=0) * 0.5
    out_ref[...] = jnp.dot(xh, w_out,
                           preferred_element_type=jnp.float32) + b_out  # (T,N)

    # ---- packed final state, written exactly once: [h_c1, h_c2, h_n1, h_n2]
    state_o_ref[0] = c1f
    state_o_ref[1] = c2f
    state_o_ref[2] = h1f
    state_o_ref[3] = h2f


def model_forward(params, x1, x2, hid):
    """x1/x2: (T,B,I); hid = [h_c1, h_c2, h_n1, h_n2], each (1,B,H)."""
    h_c1, h_c2, h_n1, h_n2 = hid
    T, B, I = x1.shape
    H = h_n1.shape[-1]
    slab1 = params["lstm1"]          # (I+H+1, 4H)
    slab2 = params["lstm2"]          # (I+H+1, 4H)
    slabo = params["out"]            # (H+1, N)
    N = slabo.shape[-1]

    # Pack the four recurrent-state tensors into one array (fewer tiny DMAs);
    # it is an intermediate, so aliasing it onto the state output is free.
    state = jnp.concatenate([h_c1, h_c2, h_n1, h_n2], axis=0)   # (4, B, H)

    vmem = pl.BlockSpec(memory_space=pltpu.MemorySpace.VMEM)
    out, state_new = pl.pallas_call(
        _fused_kernel,
        out_shape=(
            jax.ShapeDtypeStruct((T, N), jnp.float32),          # out
            jax.ShapeDtypeStruct((4, B, H), jnp.float32),       # packed state
        ),
        in_specs=[vmem] * 6,
        out_specs=(vmem, vmem),
        input_output_aliases={2: 1},     # packed state in -> packed state out
    )(x1.reshape(T * B, I), x2.reshape(T * B, I), state, slab1, slab2, slabo)

    new_hid = [state_new[0:1], state_new[1:2], state_new[2:3], state_new[3:4]]
    return out, new_hid


# ----------------------------- pure-JAX reference ----------------------------
def _lstm_ref(x, h0, c0, slab, input_dim, hidden_dim):
    w_ih = slab[:input_dim]
    w_hh = slab[input_dim:input_dim + hidden_dim]
    b = slab[input_dim + hidden_dim:]
    H = hidden_dim

    def step(carry, x_t):
        h, c = carry
        gates = x_t @ w_ih + h @ w_hh + b
        i_g = jax.nn.sigmoid(gates[:, :H])
        f_g = jax.nn.sigmoid(gates[:, H:2 * H])
        g_g = jnp.tanh(gates[:, 2 * H:3 * H])
        o_g = jax.nn.sigmoid(gates[:, 3 * H:])
        c = f_g * c + i_g * g_g
        h = o_g * jnp.tanh(c)
        return (h, c), h

    (hN, cN), outs = jax.lax.scan(step, (h0[0], c0[0]), x)
    return outs, hN[None], cN[None]


def model_ref(params, x1, x2, hid, input_dim, hidden_dim):
    h_c1, h_c2, h_n1, h_n2 = hid
    r1, h_n1, h_c1 = _lstm_ref(x1, h_n1, h_c1 + h_c2, params["lstm1"],
                               input_dim, hidden_dim)
    r2, h_n2, h_c2 = _lstm_ref(x2, h_n2, h_c1 + h_c2, params["lstm2"],
                               input_dim, hidden_dim)
    w = params["out"][:hidden_dim]
    b = params["out"][hidden_dim:]
    out = ((r1[:, -1, :] + r2[:, -1, :]) * 0.5) @ w + b
    return out, [h_c1, h_c2, h_n1, h_n2]


# ------------------------------ parameter init -------------------------------
def init_params(key, input_dim, hidden_dim, out_in=64, out_dim=10):
    ks = jax.random.split(key, 10)
    bound = 1.0 / float(hidden_dim) ** 0.5

    def u(k, shape, bnd):
        return jax.random.uniform(k, shape, jnp.float32, -bnd, bnd)

    def lstm_slab(k4):
        w_ih = u(k4[0], (input_dim, 4 * hidden_dim), bound)
        w_hh = u(k4[1], (hidden_dim, 4 * hidden_dim), bound)
        # b_ih + b_hh fused into one bias row
        b = (u(k4[2], (1, 4 * hidden_dim), bound)
             + u(k4[3], (1, 4 * hidden_dim), bound))
        # one (I+H+1, 4H) slab per LSTM, built once at init time
        return jnp.concatenate([w_ih, w_hh, b], axis=0)

    lin_bound = 1.0 / float(out_in) ** 0.5
    out_slab = jnp.concatenate(
        [u(ks[8], (out_in, out_dim), lin_bound),
         u(ks[9], (1, out_dim), lin_bound)], axis=0)        # (H+1, N)
    return {
        "lstm1": lstm_slab(ks[0:4]),
        "lstm2": lstm_slab(ks[4:8]),
        "out": out_slab,
    }


if __name__ == "__main__":
    T, B, I, H = 8, 2, 32, 64   # hidden_dim must be 64 (Linear(64, 10))
    key = jax.random.PRNGKey(0)
    kp, kx1, kx2, kh1, kh2, kh3, kh4 = jax.random.split(key, 7)

    params = init_params(kp, I, H)
    x1 = jax.random.normal(kx1, (T, B, I), jnp.float32)
    x2 = jax.random.normal(kx2, (T, B, I), jnp.float32)
    hid = [jax.random.normal(k, (1, B, H), jnp.float32)
           for k in (kh1, kh2, kh3, kh4)]          # [h_c1, h_c2, h_n1, h_n2]

    out, new_hid = jax.jit(model_forward)(params, x1, x2, hid)
    jax.block_until_ready(out)

    out_r, new_hid_r = model_ref(params, x1, x2, hid, I, H)

    ok = out.shape == (T, 10)
    ok = ok and bool(jnp.allclose(out, out_r, atol=1e-4, rtol=1e-4))
    for a, b_ in zip(new_hid, new_hid_r):
        ok = ok and a.shape == b_.shape
        ok = ok and bool(jnp.allclose(a, b_, atol=1e-4, rtol=1e-4))

    if ok:
        print("KERNEL_OK")
    else:
        print("MISMATCH")
</pallas_src>

<mosaic_0001>
module attributes {stable_mosaic.version = 11 : i64} {
  func.func @_fused_kernel(%arg0: memref<16x32xf32, #tpu.memory_space<vmem>>, %arg1: memref<16x32xf32, #tpu.memory_space<vmem>>, %arg2: memref<4x2x64xf32, #tpu.memory_space<vmem>>, %arg3: memref<97x256xf32, #tpu.memory_space<vmem>>, %arg4: memref<97x256xf32, #tpu.memory_space<vmem>>, %arg5: memref<65x10xf32, #tpu.memory_space<vmem>>, %arg6: memref<8x10xf32, #tpu.memory_space<vmem>>, %arg7: memref<4x2x64xf32, #tpu.memory_space<vmem>>) attributes {dimension_semantics = [], scalar_prefetch = 0 : i64, scratch_operands = 0 : i64, tpu.core_type = #tpu.core_type<tc>} {
    %c0 = arith.constant 0 : index
    %c0_0 = arith.constant 0 : index
    %c0_1 = arith.constant 0 : index
    %0 = vector.load %arg2[%c0, %c0_0, %c0_1] : memref<4x2x64xf32, #tpu.memory_space<vmem>>, vector<1x2x64xf32>
    %1 = vector.shape_cast %0 : vector<1x2x64xf32> to vector<2x64xf32>
    %c1 = arith.constant 1 : index
    %c0_2 = arith.constant 0 : index
    %c0_3 = arith.constant 0 : index
    %2 = vector.load %arg2[%c1, %c0_2, %c0_3] : memref<4x2x64xf32, #tpu.memory_space<vmem>>, vector<1x2x64xf32>
    %3 = vector.shape_cast %2 : vector<1x2x64xf32> to vector<2x64xf32>
    %c2 = arith.constant 2 : index
    %c0_4 = arith.constant 0 : index
    %c0_5 = arith.constant 0 : index
    %4 = vector.load %arg2[%c2, %c0_4, %c0_5] : memref<4x2x64xf32, #tpu.memory_space<vmem>>, vector<1x2x64xf32>
    %5 = vector.shape_cast %4 : vector<1x2x64xf32> to vector<2x64xf32>
    %c3 = arith.constant 3 : index
    %c0_6 = arith.constant 0 : index
    %c0_7 = arith.constant 0 : index
    %6 = vector.load %arg2[%c3, %c0_6, %c0_7] : memref<4x2x64xf32, #tpu.memory_space<vmem>>, vector<1x2x64xf32>
    %7 = vector.shape_cast %6 : vector<1x2x64xf32> to vector<2x64xf32>
    %c0_8 = arith.constant 0 : index
    %c0_9 = arith.constant 0 : index
    %8 = vector.load %arg3[%c0_8, %c0_9] : memref<97x256xf32, #tpu.memory_space<vmem>>, vector<32x256xf32>
    %c32 = arith.constant 32 : index
    %c0_10 = arith.constant 0 : index
    %9 = vector.load %arg3[%c32, %c0_10] : memref<97x256xf32, #tpu.memory_space<vmem>>, vector<64x256xf32>
    %c96 = arith.constant 96 : index
    %c0_11 = arith.constant 0 : index
    %10 = vector.load %arg3[%c96, %c0_11] : memref<97x256xf32, #tpu.memory_space<vmem>>, vector<1x256xf32>
    %c0_12 = arith.constant 0 : index
    %c0_13 = arith.constant 0 : index
    %11 = vector.load %arg4[%c0_12, %c0_13] : memref<97x256xf32, #tpu.memory_space<vmem>>, vector<32x256xf32>
    %c32_14 = arith.constant 32 : index
    %c0_15 = arith.constant 0 : index
    %12 = vector.load %arg4[%c32_14, %c0_15] : memref<97x256xf32, #tpu.memory_space<vmem>>, vector<64x256xf32>
    %c96_16 = arith.constant 96 : index
    %c0_17 = arith.constant 0 : index
    %13 = vector.load %arg4[%c96_16, %c0_17] : memref<97x256xf32, #tpu.memory_space<vmem>>, vector<1x256xf32>
    %c0_18 = arith.constant 0 : index
    %c0_19 = arith.constant 0 : index
    %14 = vector.load %arg5[%c0_18, %c0_19] : memref<65x10xf32, #tpu.memory_space<vmem>>, vector<64x10xf32>
    %c64 = arith.constant 64 : index
    %c0_20 = arith.constant 0 : index
    %15 = vector.load %arg5[%c64, %c0_20] : memref<65x10xf32, #tpu.memory_space<vmem>>, vector<1x10xf32>
    %c0_21 = arith.constant 0 : index
    %c0_22 = arith.constant 0 : index
    %16 = vector.load %arg0[%c0_21, %c0_22] : memref<16x32xf32, #tpu.memory_space<vmem>>, vector<16x32xf32>
    %cst = arith.constant dense<0.000000e+00> : vector<16x256xf32>
    %17 = tpu.matmul %16, %8, %cst {dimension_numbers = #tpu.dot_dimension_numbers<[1], [0], [0], [1], [0, 0, 1, 1], [], []>} : vector<16x32xf32>, vector<32x256xf32>, vector<16x256xf32> -> vector<16x256xf32>
    %18 = vector.broadcast %10 : vector<1x256xf32> to vector<16x256xf32>
    %19 = arith.addf %17, %18 : vector<16x256xf32>
    %c0_23 = arith.constant 0 : index
    %c0_24 = arith.constant 0 : index
    %20 = vector.load %arg1[%c0_23, %c0_24] : memref<16x32xf32, #tpu.memory_space<vmem>>, vector<16x32xf32>
    %cst_25 = arith.constant dense<0.000000e+00> : vector<16x256xf32>
    %21 = tpu.matmul %20, %11, %cst_25 {dimension_numbers = #tpu.dot_dimension_numbers<[1], [0], [0], [1], [0, 0, 1, 1], [], []>} : vector<16x32xf32>, vector<32x256xf32>, vector<16x256xf32> -> vector<16x256xf32>
    %22 = vector.broadcast %13 : vector<1x256xf32> to vector<16x256xf32>
    %23 = arith.addf %21, %22 : vector<16x256xf32>
    %24 = arith.addf %1, %3 : vector<2x64xf32>
    %25 = vector.extract_strided_slice %19 {offsets = [0, 0], sizes = [2, 256], strides = [1, 1]} : vector<16x256xf32> to vector<2x256xf32>
    %cst_26 = arith.constant dense<0.000000e+00> : vector<2x256xf32>
    %26 = tpu.matmul %5, %9, %cst_26 {dimension_numbers = #tpu.dot_dimension_numbers<[1], [0], [0], [1], [0, 0, 1, 1], [], []>} : vector<2x64xf32>, vector<64x256xf32>, vector<2x256xf32> -> vector<2x256xf32>
    %27 = arith.addf %25, %26 : vector<2x256xf32>
    %28 = vector.extract_strided_slice %27 {offsets = [0, 0], sizes = [2, 64], strides = [1, 1]} : vector<2x256xf32> to vector<2x64xf32>
    %29 = arith.negf %28 : vector<2x64xf32>
    %30 = math.exp %29 : vector<2x64xf32>
    %cst_27 = arith.constant 1.000000e+00 : f32
    %31 = vector.broadcast %cst_27 : f32 to vector<2x64xf32>
    %32 = arith.addf %31, %30 : vector<2x64xf32>
    %33 = arith.divf %31, %32 : vector<2x64xf32>
    %34 = vector.extract_strided_slice %27 {offsets = [0, 64], sizes = [2, 64], strides = [1, 1]} : vector<2x256xf32> to vector<2x64xf32>
    %35 = arith.negf %34 : vector<2x64xf32>
    %36 = math.exp %35 : vector<2x64xf32>
    %cst_28 = arith.constant 1.000000e+00 : f32
    %37 = vector.broadcast %cst_28 : f32 to vector<2x64xf32>
    %38 = arith.addf %37, %36 : vector<2x64xf32>
    %39 = arith.divf %37, %38 : vector<2x64xf32>
    %40 = vector.extract_strided_slice %27 {offsets = [0, 128], sizes = [2, 64], strides = [1, 1]} : vector<2x256xf32> to vector<2x64xf32>
    %41 = math.tanh %40 : vector<2x64xf32>
    %42 = vector.extract_strided_slice %27 {offsets = [0, 192], sizes = [2, 64], strides = [1, 1]} : vector<2x256xf32> to vector<2x64xf32>
    %43 = arith.negf %42 : vector<2x64xf32>
    %44 = math.exp %43 : vector<2x64xf32>
    %cst_29 = arith.constant 1.000000e+00 : f32
    %45 = vector.broadcast %cst_29 : f32 to vector<2x64xf32>
    %46 = arith.addf %45, %44 : vector<2x64xf32>
    %47 = arith.divf %45, %46 : vector<2x64xf32>
    %48 = arith.mulf %39, %24 : vector<2x64xf32>
    %49 = arith.mulf %33, %41 : vector<2x64xf32>
    %50 = arith.addf %48, %49 : vector<2x64xf32>
    %51 = math.tanh %50 : vector<2x64xf32>
    %52 = arith.mulf %47, %51 : vector<2x64xf32>
    %53 = vector.extract_strided_slice %19 {offsets = [2, 0], sizes = [2, 256], strides = [1, 1]} : vector<16x256xf32> to vector<2x256xf32>
    %cst_30 = arith.constant dense<0.000000e+00> : vector<2x256xf32>
    %54 = tpu.matmul %52, %9, %cst_30 {dimension_numbers = #tpu.dot_dimension_numbers<[1], [0], [0], [1], [0, 0, 1, 1], [], []>} : vector<2x64xf32>, vector<64x256xf32>, vector<2x256xf32> -> vector<2x256xf32>
    %55 = arith.addf %53, %54 : vector<2x256xf32>
    %56 = vector.extract_strided_slice %55 {offsets = [0, 0], sizes = [2, 64], strides = [1, 1]} : vector<2x256xf32> to vector<2x64xf32>
    %57 = arith.negf %56 : vector<2x64xf32>
    %58 = math.exp %57 : vector<2x64xf32>
    %cst_31 = arith.constant 1.000000e+00 : f32
    %59 = vector.broadcast %cst_31 : f32 to vector<2x64xf32>
    %60 = arith.addf %59, %58 : vector<2x64xf32>
    %61 = arith.divf %59, %60 : vector<2x64xf32>
    %62 = vector.extract_strided_slice %55 {offsets = [0, 64], sizes = [2, 64], strides = [1, 1]} : vector<2x256xf32> to vector<2x64xf32>
    %63 = arith.negf %62 : vector<2x64xf32>
    %64 = math.exp %63 : vector<2x64xf32>
    %cst_32 = arith.constant 1.000000e+00 : f32
    %65 = vector.broadcast %cst_32 : f32 to vector<2x64xf32>
    %66 = arith.addf %65, %64 : vector<2x64xf32>
    %67 = arith.divf %65, %66 : vector<2x64xf32>
    %68 = vector.extract_strided_slice %55 {offsets = [0, 128], sizes = [2, 64], strides = [1, 1]} : vector<2x256xf32> to vector<2x64xf32>
    %69 = math.tanh %68 : vector<2x64xf32>
    %70 = vector.extract_strided_slice %55 {offsets = [0, 192], sizes = [2, 64], strides = [1, 1]} : vector<2x256xf32> to vector<2x64xf32>
    %71 = arith.negf %70 : vector<2x64xf32>
    %72 = math.exp %71 : vector<2x64xf32>
    %cst_33 = arith.constant 1.000000e+00 : f32
    %73 = vector.broadcast %cst_33 : f32 to vector<2x64xf32>
    %74 = arith.addf %73, %72 : vector<2x64xf32>
    %75 = arith.divf %73, %74 : vector<2x64xf32>
    %76 = arith.mulf %67, %50 : vector<2x64xf32>
    %77 = arith.mulf %61, %69 : vector<2x64xf32>
    %78 = arith.addf %76, %77 : vector<2x64xf32>
    %79 = math.tanh %78 : vector<2x64xf32>
    %80 = arith.mulf %75, %79 : vector<2x64xf32>
    %81 = vector.extract_strided_slice %19 {offsets = [4, 0], sizes = [2, 256], strides = [1, 1]} : vector<16x256xf32> to vector<2x256xf32>
    %cst_34 = arith.constant dense<0.000000e+00> : vector<2x256xf32>
    %82 = tpu.matmul %80, %9, %cst_34 {dimension_numbers = #tpu.dot_dimension_numbers<[1], [0], [0], [1], [0, 0, 1, 1], [], []>} : vector<2x64xf32>, vector<64x256xf32>, vector<2x256xf32> -> vector<2x256xf32>
    %83 = arith.addf %81, %82 : vector<2x256xf32>
    %84 = vector.extract_strided_slice %83 {offsets = [0, 0], sizes = [2, 64], strides = [1, 1]} : vector<2x256xf32> to vector<2x64xf32>
    %85 = arith.negf %84 : vector<2x64xf32>
    %86 = math.exp %85 : vector<2x64xf32>
    %cst_35 = arith.constant 1.000000e+00 : f32
    %87 = vector.broadcast %cst_35 : f32 to vector<2x64xf32>
    %88 = arith.addf %87, %86 : vector<2x64xf32>
    %89 = arith.divf %87, %88 : vector<2x64xf32>
    %90 = vector.extract_strided_slice %83 {offsets = [0, 64], sizes = [2, 64], strides = [1, 1]} : vector<2x256xf32> to vector<2x64xf32>
    %91 = arith.negf %90 : vector<2x64xf32>
    %92 = math.exp %91 : vector<2x64xf32>
    %cst_36 = arith.constant 1.000000e+00 : f32
    %93 = vector.broadcast %cst_36 : f32 to vector<2x64xf32>
    %94 = arith.addf %93, %92 : vector<2x64xf32>
    %95 = arith.divf %93, %94 : vector<2x64xf32>
    %96 = vector.extract_strided_slice %83 {offsets = [0, 128], sizes = [2, 64], strides = [1, 1]} : vector<2x256xf32> to vector<2x64xf32>
    %97 = math.tanh %96 : vector<2x64xf32>
    %98 = vector.extract_strided_slice %83 {offsets = [0, 192], sizes = [2, 64], strides = [1, 1]} : vector<2x256xf32> to vector<2x64xf32>
    %99 = arith.negf %98 : vector<2x64xf32>
    %100 = math.exp %99 : vector<2x64xf32>
    %cst_37 = arith.constant 1.000000e+00 : f32
    %101 = vector.broadcast %cst_37 : f32 to vector<2x64xf32>
    %102 = arith.addf %101, %100 : vector<2x64xf32>
    %103 = arith.divf %101, %102 : vector<2x64xf32>
    %104 = arith.mulf %95, %78 : vector<2x64xf32>
    %105 = arith.mulf %89, %97 : vector<2x64xf32>
    %106 = arith.addf %104, %105 : vector<2x64xf32>
    %107 = math.tanh %106 : vector<2x64xf32>
    %108 = arith.mulf %103, %107 : vector<2x64xf32>
    %109 = vector.extract_strided_slice %19 {offsets = [6, 0], sizes = [2, 256], strides = [1, 1]} : vector<16x256xf32> to vector<2x256xf32>
    %cst_38 = arith.constant dense<0.000000e+00> : vector<2x256xf32>
    %110 = tpu.matmul %108, %9, %cst_38 {dimension_numbers = #tpu.dot_dimension_numbers<[1], [0], [0], [1], [0, 0, 1, 1], [], []>} : vector<2x64xf32>, vector<64x256xf32>, vector<2x256xf32> -> vector<2x256xf32>
    %111 = arith.addf %109, %110 : vector<2x256xf32>
    %112 = vector.extract_strided_slice %111 {offsets = [0, 0], sizes = [2, 64], strides = [1, 1]} : vector<2x256xf32> to vector<2x64xf32>
    %113 = arith.negf %112 : vector<2x64xf32>
    %114 = math.exp %113 : vector<2x64xf32>
    %cst_39 = arith.constant 1.000000e+00 : f32
    %115 = vector.broadcast %cst_39 : f32 to vector<2x64xf32>
    %116 = arith.addf %115, %114 : vector<2x64xf32>
    %117 = arith.divf %115, %116 : vector<2x64xf32>
    %118 = vector.extract_strided_slice %111 {offsets = [0, 64], sizes = [2, 64], strides = [1, 1]} : vector<2x256xf32> to vector<2x64xf32>
    %119 = arith.negf %118 : vector<2x64xf32>
    %120 = math.exp %119 : vector<2x64xf32>
    %cst_40 = arith.constant 1.000000e+00 : f32
    %121 = vector.broadcast %cst_40 : f32 to vector<2x64xf32>
    %122 = arith.addf %121, %120 : vector<2x64xf32>
    %123 = arith.divf %121, %122 : vector<2x64xf32>
    %124 = vector.extract_strided_slice %111 {offsets = [0, 128], sizes = [2, 64], strides = [1, 1]} : vector<2x256xf32> to vector<2x64xf32>
    %125 = math.tanh %124 : vector<2x64xf32>
    %126 = vector.extract_strided_slice %111 {offsets = [0, 192], sizes = [2, 64], strides = [1, 1]} : vector<2x256xf32> to vector<2x64xf32>
    %127 = arith.negf %126 : vector<2x64xf32>
    %128 = math.exp %127 : vector<2x64xf32>
    %cst_41 = arith.constant 1.000000e+00 : f32
    %129 = vector.broadcast %cst_41 : f32 to vector<2x64xf32>
    %130 = arith.addf %129, %128 : vector<2x64xf32>
    %131 = arith.divf %129, %130 : vector<2x64xf32>
    %132 = arith.mulf %123, %106 : vector<2x64xf32>
    %133 = arith.mulf %117, %125 : vector<2x64xf32>
    %134 = arith.addf %132, %133 : vector<2x64xf32>
    %135 = math.tanh %134 : vector<2x64xf32>
    %136 = arith.mulf %131, %135 : vector<2x64xf32>
    %137 = vector.extract_strided_slice %19 {offsets = [8, 0], sizes = [2, 256], strides = [1, 1]} : vector<16x256xf32> to vector<2x256xf32>
    %cst_42 = arith.constant dense<0.000000e+00> : vector<2x256xf32>
    %138 = tpu.matmul %136, %9, %cst_42 {dimension_numbers = #tpu.dot_dimension_numbers<[1], [0], [0], [1], [0, 0, 1, 1], [], []>} : vector<2x64xf32>, vector<64x256xf32>, vector<2x256xf32> -> vector<2x256xf32>
    %139 = arith.addf %137, %138 : vector<2x256xf32>
    %140 = vector.extract_strided_slice %139 {offsets = [0, 0], sizes = [2, 64], strides = [1, 1]} : vector<2x256xf32> to vector<2x64xf32>
    %141 = arith.negf %140 : vector<2x64xf32>
    %142 = math.exp %141 : vector<2x64xf32>
    %cst_43 = arith.constant 1.000000e+00 : f32
    %143 = vector.broadcast %cst_43 : f32 to vector<2x64xf32>
    %144 = arith.addf %143, %142 : vector<2x64xf32>
    %145 = arith.divf %143, %144 : vector<2x64xf32>
    %146 = vector.extract_strided_slice %139 {offsets = [0, 64], sizes = [2, 64], strides = [1, 1]} : vector<2x256xf32> to vector<2x64xf32>
    %147 = arith.negf %146 : vector<2x64xf32>
    %148 = math.exp %147 : vector<2x64xf32>
    %cst_44 = arith.constant 1.000000e+00 : f32
    %149 = vector.broadcast %cst_44 : f32 to vector<2x64xf32>
    %150 = arith.addf %149, %148 : vector<2x64xf32>
    %151 = arith.divf %149, %150 : vector<2x64xf32>
    %152 = vector.extract_strided_slice %139 {offsets = [0, 128], sizes = [2, 64], strides = [1, 1]} : vector<2x256xf32> to vector<2x64xf32>
    %153 = math.tanh %152 : vector<2x64xf32>
    %154 = vector.extract_strided_slice %139 {offsets = [0, 192], sizes = [2, 64], strides = [1, 1]} : vector<2x256xf32> to vector<2x64xf32>
    %155 = arith.negf %154 : vector<2x64xf32>
    %156 = math.exp %155 : vector<2x64xf32>
    %cst_45 = arith.constant 1.000000e+00 : f32
    %157 = vector.broadcast %cst_45 : f32 to vector<2x64xf32>
    %158 = arith.addf %157, %156 : vector<2x64xf32>
    %159 = arith.divf %157, %158 : vector<2x64xf32>
    %160 = arith.mulf %151, %134 : vector<2x64xf32>
    %161 = arith.mulf %145, %153 : vector<2x64xf32>
    %162 = arith.addf %160, %161 : vector<2x64xf32>
    %163 = math.tanh %162 : vector<2x64xf32>
    %164 = arith.mulf %159, %163 : vector<2x64xf32>
    %165 = vector.extract_strided_slice %19 {offsets = [10, 0], sizes = [2, 256], strides = [1, 1]} : vector<16x256xf32> to vector<2x256xf32>
    %cst_46 = arith.constant dense<0.000000e+00> : vector<2x256xf32>
    %166 = tpu.matmul %164, %9, %cst_46 {dimension_numbers = #tpu.dot_dimension_numbers<[1], [0], [0], [1], [0, 0, 1, 1], [], []>} : vector<2x64xf32>, vector<64x256xf32>, vector<2x256xf32> -> vector<2x256xf32>
    %167 = arith.addf %165, %166 : vector<2x256xf32>
    %168 = vector.extract_strided_slice %167 {offsets = [0, 0], sizes = [2, 64], strides = [1, 1]} : vector<2x256xf32> to vector<2x64xf32>
    %169 = arith.negf %168 : vector<2x64xf32>
    %170 = math.exp %169 : vector<2x64xf32>
    %cst_47 = arith.constant 1.000000e+00 : f32
    %171 = vector.broadcast %cst_47 : f32 to vector<2x64xf32>
    %172 = arith.addf %171, %170 : vector<2x64xf32>
    %173 = arith.divf %171, %172 : vector<2x64xf32>
    %174 = vector.extract_strided_slice %167 {offsets = [0, 64], sizes = [2, 64], strides = [1, 1]} : vector<2x256xf32> to vector<2x64xf32>
    %175 = arith.negf %174 : vector<2x64xf32>
    %176 = math.exp %175 : vector<2x64xf32>
    %cst_48 = arith.constant 1.000000e+00 : f32
    %177 = vector.broadcast %cst_48 : f32 to vector<2x64xf32>
    %178 = arith.addf %177, %176 : vector<2x64xf32>
    %179 = arith.divf %177, %178 : vector<2x64xf32>
    %180 = vector.extract_strided_slice %167 {offsets = [0, 128], sizes = [2, 64], strides = [1, 1]} : vector<2x256xf32> to vector<2x64xf32>
    %181 = math.tanh %180 : vector<2x64xf32>
    %182 = vector.extract_strided_slice %167 {offsets = [0, 192], sizes = [2, 64], strides = [1, 1]} : vector<2x256xf32> to vector<2x64xf32>
    %183 = arith.negf %182 : vector<2x64xf32>
    %184 = math.exp %183 : vector<2x64xf32>
    %cst_49 = arith.constant 1.000000e+00 : f32
    %185 = vector.broadcast %cst_49 : f32 to vector<2x64xf32>
    %186 = arith.addf %185, %184 : vector<2x64xf32>
    %187 = arith.divf %185, %186 : vector<2x64xf32>
    %188 = arith.mulf %179, %162 : vector<2x64xf32>
    %189 = arith.mulf %173, %181 : vector<2x64xf32>
    %190 = arith.addf %188, %189 : vector<2x64xf32>
    %191 = math.tanh %190 : vector<2x64xf32>
    %192 = arith.mulf %187, %191 : vector<2x64xf32>
    %193 = vector.extract_strided_slice %19 {offsets = [12, 0], sizes = [2, 256], strides = [1, 1]} : vector<16x256xf32> to vector<2x256xf32>
    %cst_50 = arith.constant dense<0.000000e+00> : vector<2x256xf32>
    %194 = tpu.matmul %192, %9, %cst_50 {dimension_numbers = #tpu.dot_dimension_numbers<[1], [0], [0], [1], [0, 0, 1, 1], [], []>} : vector<2x64xf32>, vector<64x256xf32>, vector<2x256xf32> -> vector<2x256xf32>
    %195 = arith.addf %193, %194 : vector<2x256xf32>
    %196 = vector.extract_strided_slice %195 {offsets = [0, 0], sizes = [2, 64], strides = [1, 1]} : vector<2x256xf32> to vector<2x64xf32>
    %197 = arith.negf %196 : vector<2x64xf32>
    %198 = math.exp %197 : vector<2x64xf32>
    %cst_51 = arith.constant 1.000000e+00 : f32
    %199 = vector.broadcast %cst_51 : f32 to vector<2x64xf32>
    %200 = arith.addf %199, %198 : vector<2x64xf32>
    %201 = arith.divf %199, %200 : vector<2x64xf32>
    %202 = vector.extract_strided_slice %195 {offsets = [0, 64], sizes = [2, 64], strides = [1, 1]} : vector<2x256xf32> to vector<2x64xf32>
    %203 = arith.negf %202 : vector<2x64xf32>
    %204 = math.exp %203 : vector<2x64xf32>
    %cst_52 = arith.constant 1.000000e+00 : f32
    %205 = vector.broadcast %cst_52 : f32 to vector<2x64xf32>
    %206 = arith.addf %205, %204 : vector<2x64xf32>
    %207 = arith.divf %205, %206 : vector<2x64xf32>
    %208 = vector.extract_strided_slice %195 {offsets = [0, 128], sizes = [2, 64], strides = [1, 1]} : vector<2x256xf32> to vector<2x64xf32>
    %209 = math.tanh %208 : vector<2x64xf32>
    %210 = vector.extract_strided_slice %195 {offsets = [0, 192], sizes = [2, 64], strides = [1, 1]} : vector<2x256xf32> to vector<2x64xf32>
    %211 = arith.negf %210 : vector<2x64xf32>
    %212 = math.exp %211 : vector<2x64xf32>
    %cst_53 = arith.constant 1.000000e+00 : f32
    %213 = vector.broadcast %cst_53 : f32 to vector<2x64xf32>
    %214 = arith.addf %213, %212 : vector<2x64xf32>
    %215 = arith.divf %213, %214 : vector<2x64xf32>
    %216 = arith.mulf %207, %190 : vector<2x64xf32>
    %217 = arith.mulf %201, %209 : vector<2x64xf32>
    %218 = arith.addf %216, %217 : vector<2x64xf32>
    %219 = math.tanh %218 : vector<2x64xf32>
    %220 = arith.mulf %215, %219 : vector<2x64xf32>
    %221 = vector.extract_strided_slice %19 {offsets = [14, 0], sizes = [2, 256], strides = [1, 1]} : vector<16x256xf32> to vector<2x256xf32>
    %cst_54 = arith.constant dense<0.000000e+00> : vector<2x256xf32>
    %222 = tpu.matmul %220, %9, %cst_54 {dimension_numbers = #tpu.dot_dimension_numbers<[1], [0], [0], [1], [0, 0, 1, 1], [], []>} : vector<2x64xf32>, vector<64x256xf32>, vector<2x256xf32> -> vector<2x256xf32>
    %223 = arith.addf %221, %222 : vector<2x256xf32>
    %224 = vector.extract_strided_slice %223 {offsets = [0, 0], sizes = [2, 64], strides = [1, 1]} : vector<2x256xf32> to vector<2x64xf32>
    %225 = arith.negf %224 : vector<2x64xf32>
    %226 = math.exp %225 : vector<2x64xf32>
    %cst_55 = arith.constant 1.000000e+00 : f32
    %227 = vector.broadcast %cst_55 : f32 to vector<2x64xf32>
    %228 = arith.addf %227, %226 : vector<2x64xf32>
    %229 = arith.divf %227, %228 : vector<2x64xf32>
    %230 = vector.extract_strided_slice %223 {offsets = [0, 64], sizes = [2, 64], strides = [1, 1]} : vector<2x256xf32> to vector<2x64xf32>
    %231 = arith.negf %230 : vector<2x64xf32>
    %232 = math.exp %231 : vector<2x64xf32>
    %cst_56 = arith.constant 1.000000e+00 : f32
    %233 = vector.broadcast %cst_56 : f32 to vector<2x64xf32>
    %234 = arith.addf %233, %232 : vector<2x64xf32>
    %235 = arith.divf %233, %234 : vector<2x64xf32>
    %236 = vector.extract_strided_slice %223 {offsets = [0, 128], sizes = [2, 64], strides = [1, 1]} : vector<2x256xf32> to vector<2x64xf32>
    %237 = math.tanh %236 : vector<2x64xf32>
    %238 = vector.extract_strided_slice %223 {offsets = [0, 192], sizes = [2, 64], strides = [1, 1]} : vector<2x256xf32> to vector<2x64xf32>
    %239 = arith.negf %238 : vector<2x64xf32>
    %240 = math.exp %239 : vector<2x64xf32>
    %cst_57 = arith.constant 1.000000e+00 : f32
    %241 = vector.broadcast %cst_57 : f32 to vector<2x64xf32>
    %242 = arith.addf %241, %240 : vector<2x64xf32>
    %243 = arith.divf %241, %242 : vector<2x64xf32>
    %244 = arith.mulf %235, %218 : vector<2x64xf32>
    %245 = arith.mulf %229, %237 : vector<2x64xf32>
    %246 = arith.addf %244, %245 : vector<2x64xf32>
    %247 = math.tanh %246 : vector<2x64xf32>
    %248 = arith.mulf %243, %247 : vector<2x64xf32>
    %249 = arith.addf %246, %3 : vector<2x64xf32>
    %250 = vector.extract_strided_slice %23 {offsets = [0, 0], sizes = [2, 256], strides = [1, 1]} : vector<16x256xf32> to vector<2x256xf32>
    %cst_58 = arith.constant dense<0.000000e+00> : vector<2x256xf32>
    %251 = tpu.matmul %7, %12, %cst_58 {dimension_numbers = #tpu.dot_dimension_numbers<[1], [0], [0], [1], [0, 0, 1, 1], [], []>} : vector<2x64xf32>, vector<64x256xf32>, vector<2x256xf32> -> vector<2x256xf32>
    %252 = arith.addf %250, %251 : vector<2x256xf32>
    %253 = vector.extract_strided_slice %252 {offsets = [0, 0], sizes = [2, 64], strides = [1, 1]} : vector<2x256xf32> to vector<2x64xf32>
    %254 = arith.negf %253 : vector<2x64xf32>
    %255 = math.exp %254 : vector<2x64xf32>
    %cst_59 = arith.constant 1.000000e+00 : f32
    %256 = vector.broadcast %cst_59 : f32 to vector<2x64xf32>
    %257 = arith.addf %256, %255 : vector<2x64xf32>
    %258 = arith.divf %256, %257 : vector<2x64xf32>
    %259 = vector.extract_strided_slice %252 {offsets = [0, 64], sizes = [2, 64], strides = [1, 1]} : vector<2x256xf32> to vector<2x64xf32>
    %260 = arith.negf %259 : vector<2x64xf32>
    %261 = math.exp %260 : vector<2x64xf32>
    %cst_60 = arith.constant 1.000000e+00 : f32
    %262 = vector.broadcast %cst_60 : f32 to vector<2x64xf32>
    %263 = arith.addf %262, %261 : vector<2x64xf32>
    %264 = arith.divf %262, %263 : vector<2x64xf32>
    %265 = vector.extract_strided_slice %252 {offsets = [0, 128], sizes = [2, 64], strides = [1, 1]} : vector<2x256xf32> to vector<2x64xf32>
    %266 = math.tanh %265 : vector<2x64xf32>
    %267 = vector.extract_strided_slice %252 {offsets = [0, 192], sizes = [2, 64], strides = [1, 1]} : vector<2x256xf32> to vector<2x64xf32>
    %268 = arith.negf %267 : vector<2x64xf32>
    %269 = math.exp %268 : vector<2x64xf32>
    %cst_61 = arith.constant 1.000000e+00 : f32
    %270 = vector.broadcast %cst_61 : f32 to vector<2x64xf32>
    %271 = arith.addf %270, %269 : vector<2x64xf32>
    %272 = arith.divf %270, %271 : vector<2x64xf32>
    %273 = arith.mulf %264, %249 : vector<2x64xf32>
    %274 = arith.mulf %258, %266 : vector<2x64xf32>
    %275 = arith.addf %273, %274 : vector<2x64xf32>
    %276 = math.tanh %275 : vector<2x64xf32>
    %277 = arith.mulf %272, %276 : vector<2x64xf32>
    %278 = vector.extract_strided_slice %23 {offsets = [2, 0], sizes = [2, 256], strides = [1, 1]} : vector<16x256xf32> to vector<2x256xf32>
    %cst_62 = arith.constant dense<0.000000e+00> : vector<2x256xf32>
    %279 = tpu.matmul %277, %12, %cst_62 {dimension_numbers = #tpu.dot_dimension_numbers<[1], [0], [0], [1], [0, 0, 1, 1], [], []>} : vector<2x64xf32>, vector<64x256xf32>, vector<2x256xf32> -> vector<2x256xf32>
    %280 = arith.addf %278, %279 : vector<2x256xf32>
    %281 = vector.extract_strided_slice %280 {offsets = [0, 0], sizes = [2, 64], strides = [1, 1]} : vector<2x256xf32> to vector<2x64xf32>
    %282 = arith.negf %281 : vector<2x64xf32>
    %283 = math.exp %282 : vector<2x64xf32>
    %cst_63 = arith.constant 1.000000e+00 : f32
    %284 = vector.broadcast %cst_63 : f32 to vector<2x64xf32>
    %285 = arith.addf %284, %283 : vector<2x64xf32>
    %286 = arith.divf %284, %285 : vector<2x64xf32>
    %287 = vector.extract_strided_slice %280 {offsets = [0, 64], sizes = [2, 64], strides = [1, 1]} : vector<2x256xf32> to vector<2x64xf32>
    %288 = arith.negf %287 : vector<2x64xf32>
    %289 = math.exp %288 : vector<2x64xf32>
    %cst_64 = arith.constant 1.000000e+00 : f32
    %290 = vector.broadcast %cst_64 : f32 to vector<2x64xf32>
    %291 = arith.addf %290, %289 : vector<2x64xf32>
    %292 = arith.divf %290, %291 : vector<2x64xf32>
    %293 = vector.extract_strided_slice %280 {offsets = [0, 128], sizes = [2, 64], strides = [1, 1]} : vector<2x256xf32> to vector<2x64xf32>
    %294 = math.tanh %293 : vector<2x64xf32>
    %295 = vector.extract_strided_slice %280 {offsets = [0, 192], sizes = [2, 64], strides = [1, 1]} : vector<2x256xf32> to vector<2x64xf32>
    %296 = arith.negf %295 : vector<2x64xf32>
    %297 = math.exp %296 : vector<2x64xf32>
    %cst_65 = arith.constant 1.000000e+00 : f32
    %298 = vector.broadcast %cst_65 : f32 to vector<2x64xf32>
    %299 = arith.addf %298, %297 : vector<2x64xf32>
    %300 = arith.divf %298, %299 : vector<2x64xf32>
    %301 = arith.mulf %292, %275 : vector<2x64xf32>
    %302 = arith.mulf %286, %294 : vector<2x64xf32>
    %303 = arith.addf %301, %302 : vector<2x64xf32>
    %304 = math.tanh %303 : vector<2x64xf32>
    %305 = arith.mulf %300, %304 : vector<2x64xf32>
    %306 = vector.extract_strided_slice %23 {offsets = [4, 0], sizes = [2, 256], strides = [1, 1]} : vector<16x256xf32> to vector<2x256xf32>
    %cst_66 = arith.constant dense<0.000000e+00> : vector<2x256xf32>
    %307 = tpu.matmul %305, %12, %cst_66 {dimension_numbers = #tpu.dot_dimension_numbers<[1], [0], [0], [1], [0, 0, 1, 1], [], []>} : vector<2x64xf32>, vector<64x256xf32>, vector<2x256xf32> -> vector<2x256xf32>
    %308 = arith.addf %306, %307 : vector<2x256xf32>
    %309 = vector.extract_strided_slice %308 {offsets = [0, 0], sizes = [2, 64], strides = [1, 1]} : vector<2x256xf32> to vector<2x64xf32>
    %310 = arith.negf %309 : vector<2x64xf32>
    %311 = math.exp %310 : vector<2x64xf32>
    %cst_67 = arith.constant 1.000000e+00 : f32
    %312 = vector.broadcast %cst_67 : f32 to vector<2x64xf32>
    %313 = arith.addf %312, %311 : vector<2x64xf32>
    %314 = arith.divf %312, %313 : vector<2x64xf32>
    %315 = vector.extract_strided_slice %308 {offsets = [0, 64], sizes = [2, 64], strides = [1, 1]} : vector<2x256xf32> to vector<2x64xf32>
    %316 = arith.negf %315 : vector<2x64xf32>
    %317 = math.exp %316 : vector<2x64xf32>
    %cst_68 = arith.constant 1.000000e+00 : f32
    %318 = vector.broadcast %cst_68 : f32 to vector<2x64xf32>
    %319 = arith.addf %318, %317 : vector<2x64xf32>
    %320 = arith.divf %318, %319 : vector<2x64xf32>
    %321 = vector.extract_strided_slice %308 {offsets = [0, 128], sizes = [2, 64], strides = [1, 1]} : vector<2x256xf32> to vector<2x64xf32>
    %322 = math.tanh %321 : vector<2x64xf32>
    %323 = vector.extract_strided_slice %308 {offsets = [0, 192], sizes = [2, 64], strides = [1, 1]} : vector<2x256xf32> to vector<2x64xf32>
    %324 = arith.negf %323 : vector<2x64xf32>
    %325 = math.exp %324 : vector<2x64xf32>
    %cst_69 = arith.constant 1.000000e+00 : f32
    %326 = vector.broadcast %cst_69 : f32 to vector<2x64xf32>
    %327 = arith.addf %326, %325 : vector<2x64xf32>
    %328 = arith.divf %326, %327 : vector<2x64xf32>
    %329 = arith.mulf %320, %303 : vector<2x64xf32>
    %330 = arith.mulf %314, %322 : vector<2x64xf32>
    %331 = arith.addf %329, %330 : vector<2x64xf32>
    %332 = math.tanh %331 : vector<2x64xf32>
    %333 = arith.mulf %328, %332 : vector<2x64xf32>
    %334 = vector.extract_strided_slice %23 {offsets = [6, 0], sizes = [2, 256], strides = [1, 1]} : vector<16x256xf32> to vector<2x256xf32>
    %cst_70 = arith.constant dense<0.000000e+00> : vector<2x256xf32>
    %335 = tpu.matmul %333, %12, %cst_70 {dimension_numbers = #tpu.dot_dimension_numbers<[1], [0], [0], [1], [0, 0, 1, 1], [], []>} : vector<2x64xf32>, vector<64x256xf32>, vector<2x256xf32> -> vector<2x256xf32>
    %336 = arith.addf %334, %335 : vector<2x256xf32>
    %337 = vector.extract_strided_slice %336 {offsets = [0, 0], sizes = [2, 64], strides = [1, 1]} : vector<2x256xf32> to vector<2x64xf32>
    %338 = arith.negf %337 : vector<2x64xf32>
    %339 = math.exp %338 : vector<2x64xf32>
    %cst_71 = arith.constant 1.000000e+00 : f32
    %340 = vector.broadcast %cst_71 : f32 to vector<2x64xf32>
    %341 = arith.addf %340, %339 : vector<2x64xf32>
    %342 = arith.divf %340, %341 : vector<2x64xf32>
    %343 = vector.extract_strided_slice %336 {offsets = [0, 64], sizes = [2, 64], strides = [1, 1]} : vector<2x256xf32> to vector<2x64xf32>
    %344 = arith.negf %343 : vector<2x64xf32>
    %345 = math.exp %344 : vector<2x64xf32>
    %cst_72 = arith.constant 1.000000e+00 : f32
    %346 = vector.broadcast %cst_72 : f32 to vector<2x64xf32>
    %347 = arith.addf %346, %345 : vector<2x64xf32>
    %348 = arith.divf %346, %347 : vector<2x64xf32>
    %349 = vector.extract_strided_slice %336 {offsets = [0, 128], sizes = [2, 64], strides = [1, 1]} : vector<2x256xf32> to vector<2x64xf32>
    %350 = math.tanh %349 : vector<2x64xf32>
    %351 = vector.extract_strided_slice %336 {offsets = [0, 192], sizes = [2, 64], strides = [1, 1]} : vector<2x256xf32> to vector<2x64xf32>
    %352 = arith.negf %351 : vector<2x64xf32>
    %353 = math.exp %352 : vector<2x64xf32>
    %cst_73 = arith.constant 1.000000e+00 : f32
    %354 = vector.broadcast %cst_73 : f32 to vector<2x64xf32>
    %355 = arith.addf %354, %353 : vector<2x64xf32>
    %356 = arith.divf %354, %355 : vector<2x64xf32>
    %357 = arith.mulf %348, %331 : vector<2x64xf32>
    %358 = arith.mulf %342, %350 : vector<2x64xf32>
    %359 = arith.addf %357, %358 : vector<2x64xf32>
    %360 = math.tanh %359 : vector<2x64xf32>
    %361 = arith.mulf %356, %360 : vector<2x64xf32>
    %362 = vector.extract_strided_slice %23 {offsets = [8, 0], sizes = [2, 256], strides = [1, 1]} : vector<16x256xf32> to vector<2x256xf32>
    %cst_74 = arith.constant dense<0.000000e+00> : vector<2x256xf32>
    %363 = tpu.matmul %361, %12, %cst_74 {dimension_numbers = #tpu.dot_dimension_numbers<[1], [0], [0], [1], [0, 0, 1, 1], [], []>} : vector<2x64xf32>, vector<64x256xf32>, vector<2x256xf32> -> vector<2x256xf32>
    %364 = arith.addf %362, %363 : vector<2x256xf32>
    %365 = vector.extract_strided_slice %364 {offsets = [0, 0], sizes = [2, 64], strides = [1, 1]} : vector<2x256xf32> to vector<2x64xf32>
    %366 = arith.negf %365 : vector<2x64xf32>
    %367 = math.exp %366 : vector<2x64xf32>
    %cst_75 = arith.constant 1.000000e+00 : f32
    %368 = vector.broadcast %cst_75 : f32 to vector<2x64xf32>
    %369 = arith.addf %368, %367 : vector<2x64xf32>
    %370 = arith.divf %368, %369 : vector<2x64xf32>
    %371 = vector.extract_strided_slice %364 {offsets = [0, 64], sizes = [2, 64], strides = [1, 1]} : vector<2x256xf32> to vector<2x64xf32>
    %372 = arith.negf %371 : vector<2x64xf32>
    %373 = math.exp %372 : vector<2x64xf32>
    %cst_76 = arith.constant 1.000000e+00 : f32
    %374 = vector.broadcast %cst_76 : f32 to vector<2x64xf32>
    %375 = arith.addf %374, %373 : vector<2x64xf32>
    %376 = arith.divf %374, %375 : vector<2x64xf32>
    %377 = vector.extract_strided_slice %364 {offsets = [0, 128], sizes = [2, 64], strides = [1, 1]} : vector<2x256xf32> to vector<2x64xf32>
    %378 = math.tanh %377 : vector<2x64xf32>
    %379 = vector.extract_strided_slice %364 {offsets = [0, 192], sizes = [2, 64], strides = [1, 1]} : vector<2x256xf32> to vector<2x64xf32>
    %380 = arith.negf %379 : vector<2x64xf32>
    %381 = math.exp %380 : vector<2x64xf32>
    %cst_77 = arith.constant 1.000000e+00 : f32
    %382 = vector.broadcast %cst_77 : f32 to vector<2x64xf32>
    %383 = arith.addf %382, %381 : vector<2x64xf32>
    %384 = arith.divf %382, %383 : vector<2x64xf32>
    %385 = arith.mulf %376, %359 : vector<2x64xf32>
    %386 = arith.mulf %370, %378 : vector<2x64xf32>
    %387 = arith.addf %385, %386 : vector<2x64xf32>
    %388 = math.tanh %387 : vector<2x64xf32>
    %389 = arith.mulf %384, %388 : vector<2x64xf32>
    %390 = vector.extract_strided_slice %23 {offsets = [10, 0], sizes = [2, 256], strides = [1, 1]} : vector<16x256xf32> to vector<2x256xf32>
    %cst_78 = arith.constant dense<0.000000e+00> : vector<2x256xf32>
    %391 = tpu.matmul %389, %12, %cst_78 {dimension_numbers = #tpu.dot_dimension_numbers<[1], [0], [0], [1], [0, 0, 1, 1], [], []>} : vector<2x64xf32>, vector<64x256xf32>, vector<2x256xf32> -> vector<2x256xf32>
    %392 = arith.addf %390, %391 : vector<2x256xf32>
    %393 = vector.extract_strided_slice %392 {offsets = [0, 0], sizes = [2, 64], strides = [1, 1]} : vector<2x256xf32> to vector<2x64xf32>
    %394 = arith.negf %393 : vector<2x64xf32>
    %395 = math.exp %394 : vector<2x64xf32>
    %cst_79 = arith.constant 1.000000e+00 : f32
    %396 = vector.broadcast %cst_79 : f32 to vector<2x64xf32>
    %397 = arith.addf %396, %395 : vector<2x64xf32>
    %398 = arith.divf %396, %397 : vector<2x64xf32>
    %399 = vector.extract_strided_slice %392 {offsets = [0, 64], sizes = [2, 64], strides = [1, 1]} : vector<2x256xf32> to vector<2x64xf32>
    %400 = arith.negf %399 : vector<2x64xf32>
    %401 = math.exp %400 : vector<2x64xf32>
    %cst_80 = arith.constant 1.000000e+00 : f32
    %402 = vector.broadcast %cst_80 : f32 to vector<2x64xf32>
    %403 = arith.addf %402, %401 : vector<2x64xf32>
    %404 = arith.divf %402, %403 : vector<2x64xf32>
    %405 = vector.extract_strided_slice %392 {offsets = [0, 128], sizes = [2, 64], strides = [1, 1]} : vector<2x256xf32> to vector<2x64xf32>
    %406 = math.tanh %405 : vector<2x64xf32>
    %407 = vector.extract_strided_slice %392 {offsets = [0, 192], sizes = [2, 64], strides = [1, 1]} : vector<2x256xf32> to vector<2x64xf32>
    %408 = arith.negf %407 : vector<2x64xf32>
    %409 = math.exp %408 : vector<2x64xf32>
    %cst_81 = arith.constant 1.000000e+00 : f32
    %410 = vector.broadcast %cst_81 : f32 to vector<2x64xf32>
    %411 = arith.addf %410, %409 : vector<2x64xf32>
    %412 = arith.divf %410, %411 : vector<2x64xf32>
    %413 = arith.mulf %404, %387 : vector<2x64xf32>
    %414 = arith.mulf %398, %406 : vector<2x64xf32>
    %415 = arith.addf %413, %414 : vector<2x64xf32>
    %416 = math.tanh %415 : vector<2x64xf32>
    %417 = arith.mulf %412, %416 : vector<2x64xf32>
    %418 = vector.extract_strided_slice %23 {offsets = [12, 0], sizes = [2, 256], strides = [1, 1]} : vector<16x256xf32> to vector<2x256xf32>
    %cst_82 = arith.constant dense<0.000000e+00> : vector<2x256xf32>
    %419 = tpu.matmul %417, %12, %cst_82 {dimension_numbers = #tpu.dot_dimension_numbers<[1], [0], [0], [1], [0, 0, 1, 1], [], []>} : vector<2x64xf32>, vector<64x256xf32>, vector<2x256xf32> -> vector<2x256xf32>
    %420 = arith.addf %418, %419 : vector<2x256xf32>
    %421 = vector.extract_strided_slice %420 {offsets = [0, 0], sizes = [2, 64], strides = [1, 1]} : vector<2x256xf32> to vector<2x64xf32>
    %422 = arith.negf %421 : vector<2x64xf32>
    %423 = math.exp %422 : vector<2x64xf32>
    %cst_83 = arith.constant 1.000000e+00 : f32
    %424 = vector.broadcast %cst_83 : f32 to vector<2x64xf32>
    %425 = arith.addf %424, %423 : vector<2x64xf32>
    %426 = arith.divf %424, %425 : vector<2x64xf32>
    %427 = vector.extract_strided_slice %420 {offsets = [0, 64], sizes = [2, 64], strides = [1, 1]} : vector<2x256xf32> to vector<2x64xf32>
    %428 = arith.negf %427 : vector<2x64xf32>
    %429 = math.exp %428 : vector<2x64xf32>
    %cst_84 = arith.constant 1.000000e+00 : f32
    %430 = vector.broadcast %cst_84 : f32 to vector<2x64xf32>
    %431 = arith.addf %430, %429 : vector<2x64xf32>
    %432 = arith.divf %430, %431 : vector<2x64xf32>
    %433 = vector.extract_strided_slice %420 {offsets = [0, 128], sizes = [2, 64], strides = [1, 1]} : vector<2x256xf32> to vector<2x64xf32>
    %434 = math.tanh %433 : vector<2x64xf32>
    %435 = vector.extract_strided_slice %420 {offsets = [0, 192], sizes = [2, 64], strides = [1, 1]} : vector<2x256xf32> to vector<2x64xf32>
    %436 = arith.negf %435 : vector<2x64xf32>
    %437 = math.exp %436 : vector<2x64xf32>
    %cst_85 = arith.constant 1.000000e+00 : f32
    %438 = vector.broadcast %cst_85 : f32 to vector<2x64xf32>
    %439 = arith.addf %438, %437 : vector<2x64xf32>
    %440 = arith.divf %438, %439 : vector<2x64xf32>
    %441 = arith.mulf %432, %415 : vector<2x64xf32>
    %442 = arith.mulf %426, %434 : vector<2x64xf32>
    %443 = arith.addf %441, %442 : vector<2x64xf32>
    %444 = math.tanh %443 : vector<2x64xf32>
    %445 = arith.mulf %440, %444 : vector<2x64xf32>
    %446 = vector.extract_strided_slice %23 {offsets = [14, 0], sizes = [2, 256], strides = [1, 1]} : vector<16x256xf32> to vector<2x256xf32>
    %cst_86 = arith.constant dense<0.000000e+00> : vector<2x256xf32>
    %447 = tpu.matmul %445, %12, %cst_86 {dimension_numbers = #tpu.dot_dimension_numbers<[1], [0], [0], [1], [0, 0, 1, 1], [], []>} : vector<2x64xf32>, vector<64x256xf32>, vector<2x256xf32> -> vector<2x256xf32>
    %448 = arith.addf %446, %447 : vector<2x256xf32>
    %449 = vector.extract_strided_slice %448 {offsets = [0, 0], sizes = [2, 64], strides = [1, 1]} : vector<2x256xf32> to vector<2x64xf32>
    %450 = arith.negf %449 : vector<2x64xf32>
    %451 = math.exp %450 : vector<2x64xf32>
    %cst_87 = arith.constant 1.000000e+00 : f32
    %452 = vector.broadcast %cst_87 : f32 to vector<2x64xf32>
    %453 = arith.addf %452, %451 : vector<2x64xf32>
    %454 = arith.divf %452, %453 : vector<2x64xf32>
    %455 = vector.extract_strided_slice %448 {offsets = [0, 64], sizes = [2, 64], strides = [1, 1]} : vector<2x256xf32> to vector<2x64xf32>
    %456 = arith.negf %455 : vector<2x64xf32>
    %457 = math.exp %456 : vector<2x64xf32>
    %cst_88 = arith.constant 1.000000e+00 : f32
    %458 = vector.broadcast %cst_88 : f32 to vector<2x64xf32>
    %459 = arith.addf %458, %457 : vector<2x64xf32>
    %460 = arith.divf %458, %459 : vector<2x64xf32>
    %461 = vector.extract_strided_slice %448 {offsets = [0, 128], sizes = [2, 64], strides = [1, 1]} : vector<2x256xf32> to vector<2x64xf32>
    %462 = math.tanh %461 : vector<2x64xf32>
    %463 = vector.extract_strided_slice %448 {offsets = [0, 192], sizes = [2, 64], strides = [1, 1]} : vector<2x256xf32> to vector<2x64xf32>
    %464 = arith.negf %463 : vector<2x64xf32>
    %465 = math.exp %464 : vector<2x64xf32>
    %cst_89 = arith.constant 1.000000e+00 : f32
    %466 = vector.broadcast %cst_89 : f32 to vector<2x64xf32>
    %467 = arith.addf %466, %465 : vector<2x64xf32>
    %468 = arith.divf %466, %467 : vector<2x64xf32>
    %469 = arith.mulf %460, %443 : vector<2x64xf32>
    %470 = arith.mulf %454, %462 : vector<2x64xf32>
    %471 = arith.addf %469, %470 : vector<2x64xf32>
    %472 = math.tanh %471 : vector<2x64xf32>
    %473 = arith.mulf %468, %472 : vector<2x64xf32>
    %474 = arith.addf %52, %277 : vector<2x64xf32>
    %475 = vector.extract_strided_slice %474 {offsets = [1, 0], sizes = [1, 64], strides = [1, 1]} : vector<2x64xf32> to vector<1x64xf32>
    %476 = arith.addf %80, %305 : vector<2x64xf32>
    %477 = vector.extract_strided_slice %476 {offsets = [1, 0], sizes = [1, 64], strides = [1, 1]} : vector<2x64xf32> to vector<1x64xf32>
    %478 = arith.addf %108, %333 : vector<2x64xf32>
    %479 = vector.extract_strided_slice %478 {offsets = [1, 0], sizes = [1, 64], strides = [1, 1]} : vector<2x64xf32> to vector<1x64xf32>
    %480 = arith.addf %136, %361 : vector<2x64xf32>
    %481 = vector.extract_strided_slice %480 {offsets = [1, 0], sizes = [1, 64], strides = [1, 1]} : vector<2x64xf32> to vector<1x64xf32>
    %482 = arith.addf %164, %389 : vector<2x64xf32>
    %483 = vector.extract_strided_slice %482 {offsets = [1, 0], sizes = [1, 64], strides = [1, 1]} : vector<2x64xf32> to vector<1x64xf32>
    %484 = arith.addf %192, %417 : vector<2x64xf32>
    %485 = vector.extract_strided_slice %484 {offsets = [1, 0], sizes = [1, 64], strides = [1, 1]} : vector<2x64xf32> to vector<1x64xf32>
    %486 = arith.addf %220, %445 : vector<2x64xf32>
    %487 = vector.extract_strided_slice %486 {offsets = [1, 0], sizes = [1, 64], strides = [1, 1]} : vector<2x64xf32> to vector<1x64xf32>
    %488 = arith.addf %248, %473 : vector<2x64xf32>
    %489 = vector.extract_strided_slice %488 {offsets = [1, 0], sizes = [1, 64], strides = [1, 1]} : vector<2x64xf32> to vector<1x64xf32>
    %490 = tpu.concatenate %475, %477, %479, %481, %483, %485, %487, %489 in 0 : vector<1x64xf32>, vector<1x64xf32>, vector<1x64xf32>, vector<1x64xf32>, vector<1x64xf32>, vector<1x64xf32>, vector<1x64xf32>, vector<1x64xf32> -> vector<8x64xf32>
    %cst_90 = arith.constant 5.000000e-01 : f32
    %491 = vector.broadcast %cst_90 : f32 to vector<8x64xf32>
    %492 = arith.mulf %490, %491 : vector<8x64xf32>
    %cst_91 = arith.constant dense<0.000000e+00> : vector<8x10xf32>
    %493 = tpu.matmul %492, %14, %cst_91 {dimension_numbers = #tpu.dot_dimension_numbers<[1], [0], [0], [1], [0, 0, 1, 1], [], []>} : vector<8x64xf32>, vector<64x10xf32>, vector<8x10xf32> -> vector<8x10xf32>
    %494 = vector.broadcast %15 : vector<1x10xf32> to vector<8x10xf32>
    %495 = arith.addf %493, %494 : vector<8x10xf32>
    %c0_92 = arith.constant 0 : index
    %c0_93 = arith.constant 0 : index
    %496 = vector.load %arg6[%c0_92, %c0_93] : memref<8x10xf32, #tpu.memory_space<vmem>>, vector<8x10xf32>
    tpu.vector_store %arg6[%c0_92, %c0_93], %495 {strides = array<i32>} : memref<8x10xf32, #tpu.memory_space<vmem>>, vector<8x10xf32>,
    %c0_94 = arith.constant 0 : index
    %c0_95 = arith.constant 0 : index
    %c0_96 = arith.constant 0 : index
    %497 = vector.load %arg7[%c0_94, %c0_95, %c0_96] : memref<4x2x64xf32, #tpu.memory_space<vmem>>, vector<1x2x64xf32>
    %498 = vector.shape_cast %497 : vector<1x2x64xf32> to vector<2x64xf32>
    %499 = vector.shape_cast %246 : vector<2x64xf32> to vector<1x2x64xf32>
    tpu.vector_store %arg7[%c0_94, %c0_95, %c0_96], %499 {strides = array<i32>} : memref<4x2x64xf32, #tpu.memory_space<vmem>>, vector<1x2x64xf32>,
    %c1_97 = arith.constant 1 : index
    %c0_98 = arith.constant 0 : index
    %c0_99 = arith.constant 0 : index
    %500 = vector.load %arg7[%c1_97, %c0_98, %c0_99] : memref<4x2x64xf32, #tpu.memory_space<vmem>>, vector<1x2x64xf32>
    %501 = vector.shape_cast %500 : vector<1x2x64xf32> to vector<2x64xf32>
    %502 = vector.shape_cast %471 : vector<2x64xf32> to vector<1x2x64xf32>
    tpu.vector_store %arg7[%c1_97, %c0_98, %c0_99], %502 {strides = array<i32>} : memref<4x2x64xf32, #tpu.memory_space<vmem>>, vector<1x2x64xf32>,
    %c2_100 = arith.constant 2 : index
    %c0_101 = arith.constant 0 : index
    %c0_102 = arith.constant 0 : index
    %503 = vector.load %arg7[%c2_100, %c0_101, %c0_102] : memref<4x2x64xf32, #tpu.memory_space<vmem>>, vector<1x2x64xf32>
    %504 = vector.shape_cast %503 : vector<1x2x64xf32> to vector<2x64xf32>
    %505 = vector.shape_cast %248 : vector<2x64xf32> to vector<1x2x64xf32>
    tpu.vector_store %arg7[%c2_100, %c0_101, %c0_102], %505 {strides = array<i32>} : memref<4x2x64xf32, #tpu.memory_space<vmem>>, vector<1x2x64xf32>,
    %c3_103 = arith.constant 3 : index
    %c0_104 = arith.constant 0 : index
    %c0_105 = arith.constant 0 : index
    %506 = vector.load %arg7[%c3_103, %c0_104, %c0_105] : memref<4x2x64xf32, #tpu.memory_space<vmem>>, vector<1x2x64xf32>
    %507 = vector.shape_cast %506 : vector<1x2x64xf32> to vector<2x64xf32>
    %508 = vector.shape_cast %473 : vector<2x64xf32> to vector<1x2x64xf32>
    tpu.vector_store %arg7[%c3_103, %c0_104, %c0_105], %508 {strides = array<i32>} : memref<4x2x64xf32, #tpu.memory_space<vmem>>, vector<1x2x64xf32>,
    return
  }
}

</mosaic_0001>

<llo_original>
// kernel: model_forward.1
$region0: #{model_forward.1}
  #allocation0 [shape = 'u32[]', space=smem, size = 0x4, offset = 0x4, fixed_abs, tag = 'smem constant byte address 0x4 - core index']
  #allocation1 [shape = 'u32[144,128]{1,0:T(1,128)}', space=vmem, size = 0x12000, scoped, tag = 'internal scratch']
  %s0 = inlined_call_operand.vmem [shape: f32[16,32], index: 0, kind: input, shape index: {}]
  %s1 = inlined_call_operand.vmem [shape: f32[16,32], index: 1, kind: input, shape index: {}]
  %s2 = inlined_call_operand.vmem [shape: f32[4,2,64], index: 2, kind: input, shape index: {}, may-alias: {2,7}]
  %s3 = inlined_call_operand.hbm [shape: f32[97,256], index: 3, kind: input, shape index: {}]
  %s4 = inlined_call_operand.hbm [shape: f32[97,256], index: 4, kind: input, shape index: {}]
  %s5 = inlined_call_operand.vmem [shape: f32[65,10], index: 5, kind: input, shape index: {}]
  %s6 = inlined_call_operand.hbm [shape: f32[8,10], index: 6, kind: output, shape index: {0}]
  %s7 = inlined_call_operand.vmem [shape: f32[4,2,64], index: 7, kind: output, shape index: {1}, may-alias: {2,7}]
  %8 = xla_tuple %s6, %s7
  %s9 = sld [smem:[#allocation0]]
  $region50: #{model_forward.1} parent=0
    _
  %s11 = ssub.s32 1, %s9
  %s12 = scalar_select 0, %s11, %s9
  $region1: #{model_forward.1} parent=0
    #allocation2 [shape = 'u8[106496]{0}', space=vmem, size = 0x1a000, scoped, tag = 'input window, operand 3, single buffered']
    #allocation3 [shape = 's32[1]{0}', space=sflag, size = 0x4, scoped, tag = 'scoped memory for model_forward.1']
    #allocation4 [shape = 's32[1]{0}', space=sflag, size = 0x4, scoped, tag = 'scoped memory for model_forward.1']
    #allocation5 [shape = 'u8[106496]{0}', space=vmem, size = 0x1a000, scoped, tag = 'input window, operand 4, single buffered']
    #allocation6 [shape = 's32[1]{0}', space=sflag, size = 0x4, scoped, tag = 'scoped memory for model_forward.1']
    #allocation7 [shape = 'u8[4096]{0}', space=vmem, size = 0x1000, scoped, tag = 'output window, operand 0, single buffered']
    %13 = vsyncpa [#allocation3], 0
    %14 = vsyncpa [#allocation6], 0
    %15 = vsyncpa [#allocation4], 0
    // Predicated region
    $region2: #{model_forward.1} parent=1 // pred_check
      _
    $region3: #{model_forward.1} parent=1 // pred_check_branch
      %17 = sbr.rel (0) target = $region5
    $region4: #{model_forward.1} parent=1 // pred_region
      _
    $region5: #{model_forward.1} parent=1 // pred_fallthru
      _
    // Predicated region
    $region6: #{model_forward.1} parent=1 // pred_check
      _
    $region7: #{model_forward.1} parent=1 // pred_check_branch
      %19 = sbr.rel (0) target = $region9
    $region8: #{model_forward.1} parent=1 // pred_region
      _
    $region9: #{model_forward.1} parent=1 // pred_fallthru
      _
    // Predicated region
    $region10: #{model_forward.1} parent=1 // pred_check
      _
    $region11: #{model_forward.1} parent=1 // pred_check_branch
      %21 = sbr.rel (0) target = $region13
    $region12: #{model_forward.1} parent=1 // pred_region
      _
    $region13: #{model_forward.1} parent=1 // pred_fallthru
      _
    // Predicated region
    $region14: #{model_forward.1} parent=1 // pred_check
      _
    $region15: #{model_forward.1} parent=1 // pred_check_branch
      %23 = sbr.rel (0) target = $region17
    $region16: #{model_forward.1} parent=1 // pred_region
      %s25 = ssub.s32 3328, 3328
      %26 = vsyncadd [#allocation3], %s25
      %s27 = sshll.u32 [#allocation2], 4
      %s28 = int_to_ptr.vmem [resolvable:$true] %s27
      %33 = dma.hbm_to_vmem [thread:$0]  %s3, 3328, %s28, [#allocation3], 256, 256, 16
    $region17: #{model_forward.1} parent=1 // pred_fallthru
      _
    // Predicated region
    $region18: #{model_forward.1} parent=1 // pred_check
      _
    $region19: #{model_forward.1} parent=1 // pred_check_branch
      %35 = sbr.rel (0) target = $region21
    $region20: #{model_forward.1} parent=1 // pred_region
      %s37 = ssub.s32 3328, 3328
      %38 = vsyncadd [#allocation6], %s37
      %s39 = sshll.u32 [#allocation5], 4
      %s40 = int_to_ptr.vmem [resolvable:$true] %s39
      %45 = dma.hbm_to_vmem [thread:$0]  %s4, 3328, %s40, [#allocation6], 256, 256, 16
    $region21: #{model_forward.1} parent=1 // pred_fallthru
      _
    // Predicated region
    $region22: #{model_forward.1} parent=1 // pred_check
      _
    $region23: #{model_forward.1} parent=1 // pred_check_branch
      %47 = sbr.rel (0) target = $region25
    $region24: #{model_forward.1} parent=1 // pred_region
      _
    $region25: #{model_forward.1} parent=1 // pred_fallthru
      _
    // Predicated region
    $region26: #{model_forward.1} parent=1 // pred_check
      _
    $region27: #{model_forward.1} parent=1 // pred_check_branch
      %49 = sbr.rel (0) target = $region29
    $region28: #{model_forward.1} parent=1 // pred_region
      %50 = dma.done [#allocation3], 3328
    $region29: #{model_forward.1} parent=1 // pred_fallthru
      _
    // Predicated region
    $region30: #{model_forward.1} parent=1 // pred_check
      _
    $region31: #{model_forward.1} parent=1 // pred_check_branch
      %52 = sbr.rel (0) target = $region33
    $region32: #{model_forward.1} parent=1 // pred_region
      %53 = dma.done [#allocation6], 3328
    $region33: #{model_forward.1} parent=1 // pred_fallthru
      _
    %v54 = vld [vmem:[%s2] sm:$0x3]
    %s55 = scalar_lea.vmem %s2, 2
    %v56 = vld [vmem:[%s55] sm:$0x3]
    %s57 = scalar_lea.vmem %s2, 4
    %v58 = vld [vmem:[%s57] sm:$0x3]
    %s59 = scalar_lea.vmem %s2, 6
    %v60 = vld [vmem:[%s59] sm:$0x3]
    %v61 = vld [vmem:[#allocation2] sm:$0xff]
    %v62 = vld [vmem:[#allocation2 + $0x8] sm:$0xff]
    %v63 = vld [vmem:[#allocation2 + $0x10] sm:$0xff]
    %v64 = vld [vmem:[#allocation2 + $0x18] sm:$0xff]
    %v65 = vld [vmem:[#allocation2 + $0x20] sm:$0xff]
    %v66 = vld [vmem:[#allocation2 + $0x28] sm:$0xff]
    %v67 = vld [vmem:[#allocation2 + $0x30] sm:$0xff]
    %v68 = vld [vmem:[#allocation2 + $0x38] sm:$0xff]
    %v69 = vld [vmem:[#allocation2 + $0x40] sm:$0xff]
    %v70 = vld [vmem:[#allocation2 + $0x48] sm:$0xff]
    %v71 = vld [vmem:[#allocation2 + $0x50] sm:$0xff]
    %v72 = vld [vmem:[#allocation2 + $0x58] sm:$0xff]
    %v73 = vld [vmem:[#allocation2 + $0x60] sm:$0xff]
    %v74 = vld [vmem:[#allocation2 + $0x68] sm:$0xff]
    %v75 = vld [vmem:[#allocation2 + $0x70] sm:$0xff]
    %v76 = vld [vmem:[#allocation2 + $0x78] sm:$0xff]
    %v77 = vld [vmem:[#allocation2 + $0x80] sm:$0xff]
    %v78 = vld [vmem:[#allocation2 + $0x88] sm:$0xff]
    %v79 = vld [vmem:[#allocation2 + $0x90] sm:$0xff]
    %v80 = vld [vmem:[#allocation2 + $0x98] sm:$0xff]
    %v81 = vld [vmem:[#allocation2 + $0xa0] sm:$0xff]
    %v82 = vld [vmem:[#allocation2 + $0xa8] sm:$0xff]
    %v83 = vld [vmem:[#allocation2 + $0xb0] sm:$0xff]
    %v84 = vld [vmem:[#allocation2 + $0xb8] sm:$0xff]
    %s85 = scalar_lea.vmem [#allocation2], 192
    %v86 = vld [vmem:[%s85] ss:$8 sm:$0x3]
    %v87 = vld [vmem:[#allocation5] sm:$0xff]
    %v88 = vld [vmem:[#allocation5 + $0x8] sm:$0xff]
    %v89 = vld [vmem:[#allocation5 + $0x10] sm:$0xff]
    %v90 = vld [vmem:[#allocation5 + $0x18] sm:$0xff]
    %v91 = vld [vmem:[#allocation5 + $0x20] sm:$0xff]
    %v92 = vld [vmem:[#allocation5 + $0x28] sm:$0xff]
    %v93 = vld [vmem:[#allocation5 + $0x30] sm:$0xff]
    %v94 = vld [vmem:[#allocation5 + $0x38] sm:$0xff]
    %v95 = vld [vmem:[#allocation5 + $0x40] sm:$0xff]
    %v96 = vld [vmem:[#allocation5 + $0x48] sm:$0xff]
    %v97 = vld [vmem:[#allocation5 + $0x50] sm:$0xff]
    %v98 = vld [vmem:[#allocation5 + $0x58] sm:$0xff]
    %v99 = vld [vmem:[#allocation5 + $0x60] sm:$0xff]
    %v100 = vld [vmem:[#allocation5 + $0x68] sm:$0xff]
    %v101 = vld [vmem:[#allocation5 + $0x70] sm:$0xff]
    %v102 = vld [vmem:[#allocation5 + $0x78] sm:$0xff]
    %v103 = vld [vmem:[#allocation5 + $0x80] sm:$0xff]
    %v104 = vld [vmem:[#allocation5 + $0x88] sm:$0xff]
    %v105 = vld [vmem:[#allocation5 + $0x90] sm:$0xff]
    %v106 = vld [vmem:[#allocation5 + $0x98] sm:$0xff]
    %v107 = vld [vmem:[#allocation5 + $0xa0] sm:$0xff]
    %v108 = vld [vmem:[#allocation5 + $0xa8] sm:$0xff]
    %v109 = vld [vmem:[#allocation5 + $0xb0] sm:$0xff]
    %v110 = vld [vmem:[#allocation5 + $0xb8] sm:$0xff]
    %s111 = scalar_lea.vmem [#allocation5], 192
    %v112 = vld [vmem:[%s111] ss:$8 sm:$0x3]
    %v113 = vld [vmem:[%s5] sm:$0xff]
    %v114 = vld [vmem:[%s5 + $0x8] sm:$0xff]
    %v115 = vld [vmem:[%s5 + $0x10] sm:$0xff]
    %v116 = vld [vmem:[%s5 + $0x18] sm:$0xff]
    %v117 = vld [vmem:[%s5 + $0x20] sm:$0xff]
    %v118 = vld [vmem:[%s5 + $0x28] sm:$0xff]
    %v119 = vld [vmem:[%s5 + $0x30] sm:$0xff]
    %v120 = vld [vmem:[%s5 + $0x38] sm:$0xff]
    %v121 = vld [vmem:[%s5 + $0x40] sm:$0x1]
    %v122 = vld [vmem:[%s0] sm:$0xff]
    %v123 = vld [vmem:[%s0 + $0x8] sm:$0xff]
    %v125 = vlaneseq
    %v126 = vshrl.u32 %v125, 7
    %v127 = vsub.s32 0, %v126
    %v128 = vrot.slane %v86, %v127
    %v129 = vlaneseq
    %v130 = vshrl.u32 %v129, 7
    %v131 = vsub.s32 1, %v130
    %v132 = vrot.slane %v86, %v131
    %vm135 = vcmask 261120
    %v137 = vsel %vm135, %v122, 0
    %v140 = vsel %vm135, %v123, 0
    %142 = vmatprep.subr.mxu0 %v62
    %143 = vmatpush1.msra.mxu0 %v61
    %144 = vmatprep.subr.mxu0 %v64
    %145 = vmatpush1.msra.mxu0 %v63
    %146 = vmatprep.subr.mxu0 %v66
    %147 = vmatpush1.msra.mxu0 %v65
    %148 = vmatprep.subr.mxu0 %v68
    %149 = vmatpush1.msra.mxu0 %v67
    %150 = vmatprep.subr.mxu0 0.0
    %151 = vmatpush1.msra.mxu0 0.0
    %152 = vmatprep.subr.mxu0 0.0
    %153 = vmatpush1.msra.mxu0 0.0
    %154 = vmatprep.subr.mxu0 0.0
    %155 = vmatpush1.msra.mxu0 0.0
    %156 = vmatprep.subr.mxu0 0.0
    %157 = vmatpush1.msra.mxu0 0.0
    %158 = vmatprep.subr.mxu0 0.0
    %159 = vmatpush1.msra.mxu0 0.0
    %160 = vmatprep.subr.mxu0 0.0
    %161 = vmatpush1.msra.mxu0 0.0
    %162 = vmatprep.subr.mxu0 0.0
    %163 = vmatpush1.msra.mxu0 0.0
    %164 = vmatprep.subr.mxu0 0.0
    %165 = vmatpush1.msra.mxu0 0.0
    %166 = vmatprep.subr.mxu0 0.0
    %167 = vmatpush1.msra.mxu0 0.0
    %168 = vmatprep.subr.mxu0 0.0
    %169 = vmatpush1.msra.mxu0 0.0
    %170 = vmatprep.subr.mxu0 0.0
    %171 = vmatpush1.msra.mxu0 0.0
    %172 = vmatprep.subr.mxu0 0.0
    %173 = vmatpush1.msra.mxu0 0.0
    %174 = vmatprep.subr.mxu0 0.0
    %175 = vmatpush1.msra.mxu0 0.0
    %176 = vmatprep.subr.mxu0 0.0
    %177 = vmatpush1.msra.mxu0 0.0
    %178 = vmatprep.subr.mxu0 0.0
    %179 = vmatpush1.msra.mxu0 0.0
    %180 = vmatprep.subr.mxu0 0.0
    %181 = vmatpush1.msra.mxu0 0.0
    %182 = vmatprep.subr.mxu0 0.0
    %183 = vmatpush1.msra.mxu0 0.0
    %184 = vmatprep.subr.mxu0 0.0
    %185 = vmatpush1.msra.mxu0 0.0
    %186 = vmatprep.subr.mxu0 0.0
    %187 = vmatpush1.msra.mxu0 0.0
    %188 = vmatprep.subr.mxu0 0.0
    %189 = vmatpush1.msra.mxu0 0.0
    %190 = vmatprep.subr.mxu0 0.0
    %191 = vmatpush1.msra.mxu0 0.0
    %192 = vmatprep.subr.mxu0 0.0
    %193 = vmatpush1.msra.mxu0 0.0
    %194 = vmatprep.subr.mxu0 0.0
    %195 = vmatpush1.msra.mxu0 0.0
    %196 = vmatprep.subr.mxu0 0.0
    %197 = vmatpush1.msra.mxu0 0.0
    %198 = vmatprep.subr.mxu0 0.0
    %199 = vmatpush1.msra.mxu0 0.0
    %200 = vmatprep.subr.mxu0 0.0
    %201 = vmatpush1.msra.mxu0 0.0
    %202 = vmatprep.subr.mxu0 0.0
    %203 = vmatpush1.msra.mxu0 0.0
    %204 = vmatprep.subr.mxu0 0.0
    %205 = vmatpush1.msra.mxu0 0.0
    %206 = vmatprep.mubr.f32.mxu0 0.0
    %207 = vmatmul.mubr.f32.gmra.mrb[0].mxu0 %v137
    %v208 = vpop.f32.mrb[0].mxu0
    %v209 = vadd.f32 %v128, %v208
    %v210 = vpop.f32.mrb[0].mxu0
    %v211 = vadd.f32 %v132, %v210
    %212 = vmatprep.mubr.f32.mxu0 0.0
    %213 = vmatmul.mubr.f32.gmra.mrb[0].mxu0 %v140
    %v214 = vpop.f32.mrb[0].mxu0
    %v215 = vadd.f32 %v128, %v214
    %v216 = vpop.f32.mrb[0].mxu0
    %v217 = vadd.f32 %v132, %v216
    %218 = vdwg.mxu0
    %v219 = vld [vmem:[%s1] sm:$0xff]
    %v220 = vld [vmem:[%s1 + $0x8] sm:$0xff]
    %v222 = vlaneseq
    %v223 = vshrl.u32 %v222, 7
    %v224 = vsub.s32 0, %v223
    %v225 = vrot.slane %v112, %v224
    %v226 = vlaneseq
    %v227 = vshrl.u32 %v226, 7
    %v228 = vsub.s32 1, %v227
    %v229 = vrot.slane %v112, %v228
    %v233 = vsel %vm135, %v219, 0
    %v236 = vsel %vm135, %v220, 0
    %238 = vmatprep.subr.mxu0 %v88
    %239 = vmatpush1.msra.mxu0 %v87
    %240 = vmatprep.subr.mxu0 %v90
    %241 = vmatpush1.msra.mxu0 %v89
    %242 = vmatprep.subr.mxu0 %v92
    %243 = vmatpush1.msra.mxu0 %v91
    %244 = vmatprep.subr.mxu0 %v94
    %245 = vmatpush1.msra.mxu0 %v93
    %246 = vmatprep.subr.mxu0 0.0
    %247 = vmatpush1.msra.mxu0 0.0
    %248 = vmatprep.subr.mxu0 0.0
    %249 = vmatpush1.msra.mxu0 0.0
    %250 = vmatprep.subr.mxu0 0.0
    %251 = vmatpush1.msra.mxu0 0.0
    %252 = vmatprep.subr.mxu0 0.0
    %253 = vmatpush1.msra.mxu0 0.0
    %254 = vmatprep.subr.mxu0 0.0
    %255 = vmatpush1.msra.mxu0 0.0
    %256 = vmatprep.subr.mxu0 0.0
    %257 = vmatpush1.msra.mxu0 0.0
    %258 = vmatprep.subr.mxu0 0.0
    %259 = vmatpush1.msra.mxu0 0.0
    %260 = vmatprep.subr.mxu0 0.0
    %261 = vmatpush1.msra.mxu0 0.0
    %262 = vmatprep.subr.mxu0 0.0
    %263 = vmatpush1.msra.mxu0 0.0
    %264 = vmatprep.subr.mxu0 0.0
    %265 = vmatpush1.msra.mxu0 0.0
    %266 = vmatprep.subr.mxu0 0.0
    %267 = vmatpush1.msra.mxu0 0.0
    %268 = vmatprep.subr.mxu0 0.0
    %269 = vmatpush1.msra.mxu0 0.0
    %270 = vmatprep.subr.mxu0 0.0
    %271 = vmatpush1.msra.mxu0 0.0
    %272 = vmatprep.subr.mxu0 0.0
    %273 = vmatpush1.msra.mxu0 0.0
    %274 = vmatprep.subr.mxu0 0.0
    %275 = vmatpush1.msra.mxu0 0.0
    %276 = vmatprep.subr.mxu0 0.0
    %277 = vmatpush1.msra.mxu0 0.0
    %278 = vmatprep.subr.mxu0 0.0
    %279 = vmatpush1.msra.mxu0 0.0
    %280 = vmatprep.subr.mxu0 0.0
    %281 = vmatpush1.msra.mxu0 0.0
    %282 = vmatprep.subr.mxu0 0.0
    %283 = vmatpush1.msra.mxu0 0.0
    %284 = vmatprep.subr.mxu0 0.0
    %285 = vmatpush1.msra.mxu0 0.0
    %286 = vmatprep.subr.mxu0 0.0
    %287 = vmatpush1.msra.mxu0 0.0
    %288 = vmatprep.subr.mxu0 0.0
    %289 = vmatpush1.msra.mxu0 0.0
    %290 = vmatprep.subr.mxu0 0.0
    %291 = vmatpush1.msra.mxu0 0.0
    %292 = vmatprep.subr.mxu0 0.0
    %293 = vmatpush1.msra.mxu0 0.0
    %294 = vmatprep.subr.mxu0 0.0
    %295 = vmatpush1.msra.mxu0 0.0
    %296 = vmatprep.subr.mxu0 0.0
    %297 = vmatpush1.msra.mxu0 0.0
    %298 = vmatprep.subr.mxu0 0.0
    %299 = vmatpush1.msra.mxu0 0.0
    %300 = vmatprep.subr.mxu0 0.0
    %301 = vmatpush1.msra.mxu0 0.0
    %302 = vmatprep.mubr.f32.mxu0 0.0
    %303 = vmatmul.mubr.f32.gmra.mrb[0].mxu0 %v233
    %v304 = vpop.f32.mrb[0].mxu0
    %v305 = vadd.f32 %v225, %v304
    %v306 = vpop.f32.mrb[0].mxu0
    %v307 = vadd.f32 %v229, %v306
    %308 = vmatprep.mubr.f32.mxu0 0.0
    %309 = vmatmul.mubr.f32.gmra.mrb[0].mxu0 %v236
    %v310 = vpop.f32.mrb[0].mxu0
    %v311 = vadd.f32 %v225, %v310
    %v312 = vpop.f32.mrb[0].mxu0
    %v313 = vadd.f32 %v229, %v312
    %314 = vdwg.mxu0
    %v315 = vadd.f32 %v54, %v56
    %vm316 = vcmask 523264
    %v318 = vsel %vm316, %v58, 0
    %320 = vmatprep.subr.mxu0 %v70
    %321 = vmatpush1.msra.mxu0 %v69
    %322 = vmatprep.subr.mxu0 %v72
    %323 = vmatpush1.msra.mxu0 %v71
    %324 = vmatprep.subr.mxu0 %v74
    %325 = vmatpush1.msra.mxu0 %v73
    %326 = vmatprep.subr.mxu0 %v76
    %327 = vmatpush1.msra.mxu0 %v75
    %328 = vmatprep.subr.mxu0 %v78
    %329 = vmatpush1.msra.mxu0 %v77
    %330 = vmatprep.subr.mxu0 %v80
    %331 = vmatpush1.msra.mxu0 %v79
    %332 = vmatprep.subr.mxu0 %v82
    %333 = vmatpush1.msra.mxu0 %v81
    %334 = vmatprep.subr.mxu0 %v84
    %335 = vmatpush1.msra.mxu0 %v83
    %336 = vmatprep.subr.mxu0 0.0
    %337 = vmatpush1.msra.mxu0 0.0
    %338 = vmatprep.subr.mxu0 0.0
    %339 = vmatpush1.msra.mxu0 0.0
    %340 = vmatprep.subr.mxu0 0.0
    %341 = vmatpush1.msra.mxu0 0.0
    %342 = vmatprep.subr.mxu0 0.0
    %343 = vmatpush1.msra.mxu0 0.0
    %344 = vmatprep.subr.mxu0 0.0
    %345 = vmatpush1.msra.mxu0 0.0
    %346 = vmatprep.subr.mxu0 0.0
    %347 = vmatpush1.msra.mxu0 0.0
    %348 = vmatprep.subr.mxu0 0.0
    %349 = vmatpush1.msra.mxu0 0.0
    %350 = vmatprep.subr.mxu0 0.0
    %351 = vmatpush1.msra.mxu0 0.0
    %352 = vmatprep.subr.mxu0 0.0
    %353 = vmatpush1.msra.mxu0 0.0
    %354 = vmatprep.subr.mxu0 0.0
    %355 = vmatpush1.msra.mxu0 0.0
    %356 = vmatprep.subr.mxu0 0.0
    %357 = vmatpush1.msra.mxu0 0.0
    %358 = vmatprep.subr.mxu0 0.0
    %359 = vmatpush1.msra.mxu0 0.0
    %360 = vmatprep.subr.mxu0 0.0
    %361 = vmatpush1.msra.mxu0 0.0
    %362 = vmatprep.subr.mxu0 0.0
    %363 = vmatpush1.msra.mxu0 0.0
    %364 = vmatprep.subr.mxu0 0.0
    %365 = vmatpush1.msra.mxu0 0.0
    %366 = vmatprep.subr.mxu0 0.0
    %367 = vmatpush1.msra.mxu0 0.0
    %368 = vmatprep.subr.mxu0 0.0
    %369 = vmatpush1.msra.mxu0 0.0
    %370 = vmatprep.subr.mxu0 0.0
    %371 = vmatpush1.msra.mxu0 0.0
    %372 = vmatprep.subr.mxu0 0.0
    %373 = vmatpush1.msra.mxu0 0.0
    %374 = vmatprep.subr.mxu0 0.0
    %375 = vmatpush1.msra.mxu0 0.0
    %376 = vmatprep.subr.mxu0 0.0
    %377 = vmatpush1.msra.mxu0 0.0
    %378 = vmatprep.subr.mxu0 0.0
    %379 = vmatpush1.msra.mxu0 0.0
    %380 = vmatprep.subr.mxu0 0.0
    %381 = vmatpush1.msra.mxu0 0.0
    %382 = vmatprep.subr.mxu0 0.0
    %383 = vmatpush1.msra.mxu0 0.0
    %384 = vmatprep.mubr.f32.mxu0 0.0
    %385 = vmatmul.mubr.f32.gmra.mrb[0].mxu0 %v318
    %v386 = vpop.f32.mrb[0].mxu0
    %v387 = vadd.f32 0.0, %v386
    %v388 = vpop.f32.mrb[0].mxu0
    %v389 = vadd.f32 0.0, %v388
    %390 = vdwg.mxu0
    %v391 = vadd.f32 %v209, %v387
    %v392 = vadd.f32 %v211, %v389
    %v393 = vxor.u32 %v391, 2147483648
    %v394 = vmul.f32 %v393, 1.442695
    %v395 = vpow.pop %v394
    %v396 = vadd.f32 %v395, 1.0
    %v397 = vrcp.pop %v396
    %v398 = vmul.f32 1.0, %v397
    %v399 = vtanh.pop %v392
    %v400 = vxor.u32 %v392, 2147483648
    %v401 = vmul.f32 %v400, 1.442695
    %v402 = vpow.pop %v401
    %v403 = vadd.f32 %v402, 1.0
    %v404 = vrcp.pop %v403
    %v405 = vmul.f32 1.0, %v404
    %407 = vrot.lane.b32.xlu0 %v315, 64
    %v408 = vpop.permute.xlu0 %407
    %v410 = vmul.f32 %v398, %v408
    %v411 = vmul.f32 %v398, %v399
    %413 = vrot.lane.b32.xlu0 %v411, 64
    %v414 = vpop.permute.xlu0 %413
    %v416 = vadd.f32 %v410, %v414
    %v417 = vtanh.pop %v416
    %v418 = vmul.f32 %v405, %v417
    %420 = vrot.lane.b32.xlu0 %v418, 64
    %v421 = vpop.permute.xlu0 %420
    %v422 = vsel %vm316, %v421, 0
    %424 = vmatprep.subr.mxu0 %v70
    %425 = vmatpush1.msra.mxu0 %v69
    %426 = vmatprep.subr.mxu0 %v72
    %427 = vmatpush1.msra.mxu0 %v71
    %428 = vmatprep.subr.mxu0 %v74
    %429 = vmatpush1.msra.mxu0 %v73
    %430 = vmatprep.subr.mxu0 %v76
    %431 = vmatpush1.msra.mxu0 %v75
    %432 = vmatprep.subr.mxu0 %v78
    %433 = vmatpush1.msra.mxu0 %v77
    %434 = vmatprep.subr.mxu0 %v80
    %435 = vmatpush1.msra.mxu0 %v79
    %436 = vmatprep.subr.mxu0 %v82
    %437 = vmatpush1.msra.mxu0 %v81
    %438 = vmatprep.subr.mxu0 %v84
    %439 = vmatpush1.msra.mxu0 %v83
    %440 = vmatprep.subr.mxu0 0.0
    %441 = vmatpush1.msra.mxu0 0.0
    %442 = vmatprep.subr.mxu0 0.0
    %443 = vmatpush1.msra.mxu0 0.0
    %444 = vmatprep.subr.mxu0 0.0
    %445 = vmatpush1.msra.mxu0 0.0
    %446 = vmatprep.subr.mxu0 0.0
    %447 = vmatpush1.msra.mxu0 0.0
    %448 = vmatprep.subr.mxu0 0.0
    %449 = vmatpush1.msra.mxu0 0.0
    %450 = vmatprep.subr.mxu0 0.0
    %451 = vmatpush1.msra.mxu0 0.0
    %452 = vmatprep.subr.mxu0 0.0
    %453 = vmatpush1.msra.mxu0 0.0
    %454 = vmatprep.subr.mxu0 0.0
    %455 = vmatpush1.msra.mxu0 0.0
    %456 = vmatprep.subr.mxu0 0.0
    %457 = vmatpush1.msra.mxu0 0.0
    %458 = vmatprep.subr.mxu0 0.0
    %459 = vmatpush1.msra.mxu0 0.0
    %460 = vmatprep.subr.mxu0 0.0
    %461 = vmatpush1.msra.mxu0 0.0
    %462 = vmatprep.subr.mxu0 0.0
    %463 = vmatpush1.msra.mxu0 0.0
    %464 = vmatprep.subr.mxu0 0.0
    %465 = vmatpush1.msra.mxu0 0.0
    %466 = vmatprep.subr.mxu0 0.0
    %467 = vmatpush1.msra.mxu0 0.0
    %468 = vmatprep.subr.mxu0 0.0
    %469 = vmatpush1.msra.mxu0 0.0
    %470 = vmatprep.subr.mxu0 0.0
    %471 = vmatpush1.msra.mxu0 0.0
    %472 = vmatprep.subr.mxu0 0.0
    %473 = vmatpush1.msra.mxu0 0.0
    %474 = vmatprep.subr.mxu0 0.0
    %475 = vmatpush1.msra.mxu0 0.0
    %476 = vmatprep.subr.mxu0 0.0
    %477 = vmatpush1.msra.mxu0 0.0
    %478 = vmatprep.subr.mxu0 0.0
    %479 = vmatpush1.msra.mxu0 0.0
    %480 = vmatprep.subr.mxu0 0.0
    %481 = vmatpush1.msra.mxu0 0.0
    %482 = vmatprep.subr.mxu0 0.0
    %483 = vmatpush1.msra.mxu0 0.0
    %484 = vmatprep.subr.mxu0 0.0
    %485 = vmatpush1.msra.mxu0 0.0
    %486 = vmatprep.subr.mxu0 0.0
    %487 = vmatpush1.msra.mxu0 0.0
    %488 = vmatprep.mubr.f32.mxu0 0.0
    %489 = vmatmul.mubr.f32.gmra.mrb[0].mxu0 %v422
    %v490 = vpop.f32.mrb[0].mxu0
    %v491 = vadd.f32 0.0, %v490
    %v492 = vpop.f32.mrb[0].mxu0
    %v493 = vadd.f32 0.0, %v492
    %494 = vdwg.mxu0
    %v497 = vrot.slane %v491, 6
    %v498 = vrot.slane %v493, 6
    %v501 = vadd.f32 %v209, %v497
    %v502 = vadd.f32 %v211, %v498
    %v503 = vxor.u32 %v501, 2147483648
    %v504 = vmul.f32 %v503, 1.442695
    %v505 = vpow.pop %v504
    %v506 = vadd.f32 %v505, 1.0
    %v507 = vrcp.pop %v506
    %v508 = vmul.f32 1.0, %v507
    %v509 = vtanh.pop %v502
    %v510 = vxor.u32 %v502, 2147483648
    %v511 = vmul.f32 %v510, 1.442695
    %v512 = vpow.pop %v511
    %v513 = vadd.f32 %v512, 1.0
    %v514 = vrcp.pop %v513
    %v515 = vmul.f32 1.0, %v514
    %v517 = vrot.slane %v416, 6
    %v519 = vmul.f32 %v508, %v517
    %v520 = vmul.f32 %v508, %v509
    %522 = vrot.lane.b32.xlu0 %v520, 64
    %v523 = vpop.permute.xlu0 %522
    %v525 = vadd.f32 %v519, %v523
    %v526 = vtanh.pop %v525
    %v527 = vmul.f32 %v515, %v526
    %v529 = vrot.slane %v527, 2
    %530 = vrot.lane.b32.xlu0 %v529, 64
    %v531 = vpop.permute.xlu0 %530
    %v532 = vsel %vm316, %v531, 0
    %534 = vmatprep.subr.mxu0 %v70
    %535 = vmatpush1.msra.mxu0 %v69
    %536 = vmatprep.subr.mxu0 %v72
    %537 = vmatpush1.msra.mxu0 %v71
    %538 = vmatprep.subr.mxu0 %v74
    %539 = vmatpush1.msra.mxu0 %v73
    %540 = vmatprep.subr.mxu0 %v76
    %541 = vmatpush1.msra.mxu0 %v75
    %542 = vmatprep.subr.mxu0 %v78
    %543 = vmatpush1.msra.mxu0 %v77
    %544 = vmatprep.subr.mxu0 %v80
    %545 = vmatpush1.msra.mxu0 %v79
    %546 = vmatprep.subr.mxu0 %v82
    %547 = vmatpush1.msra.mxu0 %v81
    %548 = vmatprep.subr.mxu0 %v84
    %549 = vmatpush1.msra.mxu0 %v83
    %550 = vmatprep.subr.mxu0 0.0
    %551 = vmatpush1.msra.mxu0 0.0
    %552 = vmatprep.subr.mxu0 0.0
    %553 = vmatpush1.msra.mxu0 0.0
    %554 = vmatprep.subr.mxu0 0.0
    %555 = vmatpush1.msra.mxu0 0.0
    %556 = vmatprep.subr.mxu0 0.0
    %557 = vmatpush1.msra.mxu0 0.0
    %558 = vmatprep.subr.mxu0 0.0
    %559 = vmatpush1.msra.mxu0 0.0
    %560 = vmatprep.subr.mxu0 0.0
    %561 = vmatpush1.msra.mxu0 0.0
    %562 = vmatprep.subr.mxu0 0.0
    %563 = vmatpush1.msra.mxu0 0.0
    %564 = vmatprep.subr.mxu0 0.0
    %565 = vmatpush1.msra.mxu0 0.0
    %566 = vmatprep.subr.mxu0 0.0
    %567 = vmatpush1.msra.mxu0 0.0
    %568 = vmatprep.subr.mxu0 0.0
    %569 = vmatpush1.msra.mxu0 0.0
    %570 = vmatprep.subr.mxu0 0.0
    %571 = vmatpush1.msra.mxu0 0.0
    %572 = vmatprep.subr.mxu0 0.0
    %573 = vmatpush1.msra.mxu0 0.0
    %574 = vmatprep.subr.mxu0 0.0
    %575 = vmatpush1.msra.mxu0 0.0
    %576 = vmatprep.subr.mxu0 0.0
    %577 = vmatpush1.msra.mxu0 0.0
    %578 = vmatprep.subr.mxu0 0.0
    %579 = vmatpush1.msra.mxu0 0.0
    %580 = vmatprep.subr.mxu0 0.0
    %581 = vmatpush1.msra.mxu0 0.0
    %582 = vmatprep.subr.mxu0 0.0
    %583 = vmatpush1.msra.mxu0 0.0
    %584 = vmatprep.subr.mxu0 0.0
    %585 = vmatpush1.msra.mxu0 0.0
    %586 = vmatprep.subr.mxu0 0.0
    %587 = vmatpush1.msra.mxu0 0.0
    %588 = vmatprep.subr.mxu0 0.0
    %589 = vmatpush1.msra.mxu0 0.0
    %590 = vmatprep.subr.mxu0 0.0
    %591 = vmatpush1.msra.mxu0 0.0
    %592 = vmatprep.subr.mxu0 0.0
    %593 = vmatpush1.msra.mxu0 0.0
    %594 = vmatprep.subr.mxu0 0.0
    %595 = vmatpush1.msra.mxu0 0.0
    %596 = vmatprep.subr.mxu0 0.0
    %597 = vmatpush1.msra.mxu0 0.0
    %598 = vmatprep.mubr.f32.mxu0 0.0
    %599 = vmatmul.mubr.f32.gmra.mrb[0].mxu0 %v532
    %v600 = vpop.f32.mrb[0].mxu0
    %v601 = vadd.f32 0.0, %v600
    %v602 = vpop.f32.mrb[0].mxu0
    %v603 = vadd.f32 0.0, %v602
    %604 = vdwg.mxu0
    %v607 = vrot.slane %v601, 4
    %v608 = vrot.slane %v603, 4
    %v611 = vadd.f32 %v209, %v607
    %v612 = vadd.f32 %v211, %v608
    %v613 = vxor.u32 %v611, 2147483648
    %v614 = vmul.f32 %v613, 1.442695
    %v615 = vpow.pop %v614
    %v616 = vadd.f32 %v615, 1.0
    %v617 = vrcp.pop %v616
    %v618 = vmul.f32 1.0, %v617
    %v619 = vtanh.pop %v612
    %v620 = vxor.u32 %v612, 2147483648
    %v621 = vmul.f32 %v620, 1.442695
    %v622 = vpow.pop %v621
    %v623 = vadd.f32 %v622, 1.0
    %v624 = vrcp.pop %v623
    %v625 = vmul.f32 1.0, %v624
    %v627 = vrot.slane %v525, 6
    %v629 = vmul.f32 %v618, %v627
    %v630 = vmul.f32 %v618, %v619
    %632 = vrot.lane.b32.xlu0 %v630, 64
    %v633 = vpop.permute.xlu0 %632
    %v635 = vadd.f32 %v629, %v633
    %v636 = vtanh.pop %v635
    %v637 = vmul.f32 %v625, %v636
    %v639 = vrot.slane %v637, 4
    %640 = vrot.lane.b32.xlu0 %v639, 64
    %v641 = vpop.permute.xlu0 %640
    %v642 = vsel %vm316, %v641, 0
    %644 = vmatprep.subr.mxu0 %v70
    %645 = vmatpush1.msra.mxu0 %v69
    %646 = vmatprep.subr.mxu0 %v72
    %647 = vmatpush1.msra.mxu0 %v71
    %648 = vmatprep.subr.mxu0 %v74
    %649 = vmatpush1.msra.mxu0 %v73
    %650 = vmatprep.subr.mxu0 %v76
    %651 = vmatpush1.msra.mxu0 %v75
    %652 = vmatprep.subr.mxu0 %v78
    %653 = vmatpush1.msra.mxu0 %v77
    %654 = vmatprep.subr.mxu0 %v80
    %655 = vmatpush1.msra.mxu0 %v79
    %656 = vmatprep.subr.mxu0 %v82
    %657 = vmatpush1.msra.mxu0 %v81
    %658 = vmatprep.subr.mxu0 %v84
    %659 = vmatpush1.msra.mxu0 %v83
    %660 = vmatprep.subr.mxu0 0.0
    %661 = vmatpush1.msra.mxu0 0.0
    %662 = vmatprep.subr.mxu0 0.0
    %663 = vmatpush1.msra.mxu0 0.0
    %664 = vmatprep.subr.mxu0 0.0
    %665 = vmatpush1.msra.mxu0 0.0
    %666 = vmatprep.subr.mxu0 0.0
    %667 = vmatpush1.msra.mxu0 0.0
    %668 = vmatprep.subr.mxu0 0.0
    %669 = vmatpush1.msra.mxu0 0.0
    %670 = vmatprep.subr.mxu0 0.0
    %671 = vmatpush1.msra.mxu0 0.0
    %672 = vmatprep.subr.mxu0 0.0
    %673 = vmatpush1.msra.mxu0 0.0
    %674 = vmatprep.subr.mxu0 0.0
    %675 = vmatpush1.msra.mxu0 0.0
    %676 = vmatprep.subr.mxu0 0.0
    %677 = vmatpush1.msra.mxu0 0.0
    %678 = vmatprep.subr.mxu0 0.0
    %679 = vmatpush1.msra.mxu0 0.0
    %680 = vmatprep.subr.mxu0 0.0
    %681 = vmatpush1.msra.mxu0 0.0
    %682 = vmatprep.subr.mxu0 0.0
    %683 = vmatpush1.msra.mxu0 0.0
    %684 = vmatprep.subr.mxu0 0.0
    %685 = vmatpush1.msra.mxu0 0.0
    %686 = vmatprep.subr.mxu0 0.0
    %687 = vmatpush1.msra.mxu0 0.0
    %688 = vmatprep.subr.mxu0 0.0
    %689 = vmatpush1.msra.mxu0 0.0
    %690 = vmatprep.subr.mxu0 0.0
    %691 = vmatpush1.msra.mxu0 0.0
    %692 = vmatprep.subr.mxu0 0.0
    %693 = vmatpush1.msra.mxu0 0.0
    %694 = vmatprep.subr.mxu0 0.0
    %695 = vmatpush1.msra.mxu0 0.0
    %696 = vmatprep.subr.mxu0 0.0
    %697 = vmatpush1.msra.mxu0 0.0
    %698 = vmatprep.subr.mxu0 0.0
    %699 = vmatpush1.msra.mxu0 0.0
    %700 = vmatprep.subr.mxu0 0.0
    %701 = vmatpush1.msra.mxu0 0.0
    %702 = vmatprep.subr.mxu0 0.0
    %703 = vmatpush1.msra.mxu0 0.0
    %704 = vmatprep.subr.mxu0 0.0
    %705 = vmatpush1.msra.mxu0 0.0
    %706 = vmatprep.subr.mxu0 0.0
    %707 = vmatpush1.msra.mxu0 0.0
    %708 = vmatprep.mubr.f32.mxu0 0.0
    %709 = vmatmul.mubr.f32.gmra.mrb[0].mxu0 %v642
    %v710 = vpop.f32.mrb[0].mxu0
    %v711 = vadd.f32 0.0, %v710
    %v712 = vpop.f32.mrb[0].mxu0
    %v713 = vadd.f32 0.0, %v712
    %714 = vdwg.mxu0
    %v717 = vrot.slane %v711, 2
    %v718 = vrot.slane %v713, 2
    %v721 = vadd.f32 %v209, %v717
    %v722 = vadd.f32 %v211, %v718
    %v723 = vxor.u32 %v721, 2147483648
    %v724 = vmul.f32 %v723, 1.442695
    %v725 = vpow.pop %v724
    %v726 = vadd.f32 %v725, 1.0
    %v727 = vrcp.pop %v726
    %v728 = vmul.f32 1.0, %v727
    %v729 = vtanh.pop %v722
    %v730 = vxor.u32 %v722, 2147483648
    %v731 = vmul.f32 %v730, 1.442695
    %v732 = vpow.pop %v731
    %v733 = vadd.f32 %v732, 1.0
    %v734 = vrcp.pop %v733
    %v735 = vmul.f32 1.0, %v734
    %v737 = vrot.slane %v635, 6
    %v739 = vmul.f32 %v728, %v737
    %v740 = vmul.f32 %v728, %v729
    %742 = vrot.lane.b32.xlu0 %v740, 64
    %v743 = vpop.permute.xlu0 %742
    %v745 = vadd.f32 %v739, %v743
    %v746 = vtanh.pop %v745
    %v747 = vmul.f32 %v735, %v746
    %v749 = vrot.slane %v747, 6
    %750 = vrot.lane.b32.xlu0 %v749, 64
    %v751 = vpop.permute.xlu0 %750
    %v752 = vsel %vm316, %v751, 0
    %754 = vmatprep.subr.mxu0 %v70
    %755 = vmatpush1.msra.mxu0 %v69
    %756 = vmatprep.subr.mxu0 %v72
    %757 = vmatpush1.msra.mxu0 %v71
    %758 = vmatprep.subr.mxu0 %v74
    %759 = vmatpush1.msra.mxu0 %v73
    %760 = vmatprep.subr.mxu0 %v76
    %761 = vmatpush1.msra.mxu0 %v75
    %762 = vmatprep.subr.mxu0 %v78
    %763 = vmatpush1.msra.mxu0 %v77
    %764 = vmatprep.subr.mxu0 %v80
    %765 = vmatpush1.msra.mxu0 %v79
    %766 = vmatprep.subr.mxu0 %v82
    %767 = vmatpush1.msra.mxu0 %v81
    %768 = vmatprep.subr.mxu0 %v84
    %769 = vmatpush1.msra.mxu0 %v83
    %770 = vmatprep.subr.mxu0 0.0
    %771 = vmatpush1.msra.mxu0 0.0
    %772 = vmatprep.subr.mxu0 0.0
    %773 = vmatpush1.msra.mxu0 0.0
    %774 = vmatprep.subr.mxu0 0.0
    %775 = vmatpush1.msra.mxu0 0.0
    %776 = vmatprep.subr.mxu0 0.0
    %777 = vmatpush1.msra.mxu0 0.0
    %778 = vmatprep.subr.mxu0 0.0
    %779 = vmatpush1.msra.mxu0 0.0
    %780 = vmatprep.subr.mxu0 0.0
    %781 = vmatpush1.msra.mxu0 0.0
    %782 = vmatprep.subr.mxu0 0.0
    %783 = vmatpush1.msra.mxu0 0.0
    %784 = vmatprep.subr.mxu0 0.0
    %785 = vmatpush1.msra.mxu0 0.0
    %786 = vmatprep.subr.mxu0 0.0
    %787 = vmatpush1.msra.mxu0 0.0
    %788 = vmatprep.subr.mxu0 0.0
    %789 = vmatpush1.msra.mxu0 0.0
    %790 = vmatprep.subr.mxu0 0.0
    %791 = vmatpush1.msra.mxu0 0.0
    %792 = vmatprep.subr.mxu0 0.0
    %793 = vmatpush1.msra.mxu0 0.0
    %794 = vmatprep.subr.mxu0 0.0
    %795 = vmatpush1.msra.mxu0 0.0
    %796 = vmatprep.subr.mxu0 0.0
    %797 = vmatpush1.msra.mxu0 0.0
    %798 = vmatprep.subr.mxu0 0.0
    %799 = vmatpush1.msra.mxu0 0.0
    %800 = vmatprep.subr.mxu0 0.0
    %801 = vmatpush1.msra.mxu0 0.0
    %802 = vmatprep.subr.mxu0 0.0
    %803 = vmatpush1.msra.mxu0 0.0
    %804 = vmatprep.subr.mxu0 0.0
    %805 = vmatpush1.msra.mxu0 0.0
    %806 = vmatprep.subr.mxu0 0.0
    %807 = vmatpush1.msra.mxu0 0.0
    %808 = vmatprep.subr.mxu0 0.0
    %809 = vmatpush1.msra.mxu0 0.0
    %810 = vmatprep.subr.mxu0 0.0
    %811 = vmatpush1.msra.mxu0 0.0
    %812 = vmatprep.subr.mxu0 0.0
    %813 = vmatpush1.msra.mxu0 0.0
    %814 = vmatprep.subr.mxu0 0.0
    %815 = vmatpush1.msra.mxu0 0.0
    %816 = vmatprep.subr.mxu0 0.0
    %817 = vmatpush1.msra.mxu0 0.0
    %818 = vmatprep.mubr.f32.mxu0 0.0
    %819 = vmatmul.mubr.f32.gmra.mrb[0].mxu0 %v752
    %v820 = vpop.f32.mrb[0].mxu0
    %v821 = vadd.f32 0.0, %v820
    %v822 = vpop.f32.mrb[0].mxu0
    %v823 = vadd.f32 0.0, %v822
    %824 = vdwg.mxu0
    %v825 = vadd.f32 %v215, %v821
    %v826 = vadd.f32 %v217, %v823
    %v827 = vxor.u32 %v825, 2147483648
    %v828 = vmul.f32 %v827, 1.442695
    %v829 = vpow.pop %v828
    %v830 = vadd.f32 %v829, 1.0
    %v831 = vrcp.pop %v830
    %v832 = vmul.f32 1.0, %v831
    %v833 = vtanh.pop %v826
    %v834 = vxor.u32 %v826, 2147483648
    %v835 = vmul.f32 %v834, 1.442695
    %v836 = vpow.pop %v835
    %v837 = vadd.f32 %v836, 1.0
    %v838 = vrcp.pop %v837
    %v839 = vmul.f32 1.0, %v838
    %v841 = vrot.slane %v745, 6
    %v843 = vmul.f32 %v832, %v841
    %v844 = vmul.f32 %v832, %v833
    %846 = vrot.lane.b32.xlu0 %v844, 64
    %v847 = vpop.permute.xlu0 %846
    %v849 = vadd.f32 %v843, %v847
    %v850 = vtanh.pop %v849
    %v851 = vmul.f32 %v839, %v850
    %853 = vrot.lane.b32.xlu0 %v851, 64
    %v854 = vpop.permute.xlu0 %853
    %v855 = vsel %vm316, %v854, 0
    %857 = vmatprep.subr.mxu0 %v70
    %858 = vmatpush1.msra.mxu0 %v69
    %859 = vmatprep.subr.mxu0 %v72
    %860 = vmatpush1.msra.mxu0 %v71
    %861 = vmatprep.subr.mxu0 %v74
    %862 = vmatpush1.msra.mxu0 %v73
    %863 = vmatprep.subr.mxu0 %v76
    %864 = vmatpush1.msra.mxu0 %v75
    %865 = vmatprep.subr.mxu0 %v78
    %866 = vmatpush1.msra.mxu0 %v77
    %867 = vmatprep.subr.mxu0 %v80
    %868 = vmatpush1.msra.mxu0 %v79
    %869 = vmatprep.subr.mxu0 %v82
    %870 = vmatpush1.msra.mxu0 %v81
    %871 = vmatprep.subr.mxu0 %v84
    %872 = vmatpush1.msra.mxu0 %v83
    %873 = vmatprep.subr.mxu0 0.0
    %874 = vmatpush1.msra.mxu0 0.0
    %875 = vmatprep.subr.mxu0 0.0
    %876 = vmatpush1.msra.mxu0 0.0
    %877 = vmatprep.subr.mxu0 0.0
    %878 = vmatpush1.msra.mxu0 0.0
    %879 = vmatprep.subr.mxu0 0.0
    %880 = vmatpush1.msra.mxu0 0.0
    %881 = vmatprep.subr.mxu0 0.0
    %882 = vmatpush1.msra.mxu0 0.0
    %883 = vmatprep.subr.mxu0 0.0
    %884 = vmatpush1.msra.mxu0 0.0
    %885 = vmatprep.subr.mxu0 0.0
    %886 = vmatpush1.msra.mxu0 0.0
    %887 = vmatprep.subr.mxu0 0.0
    %888 = vmatpush1.msra.mxu0 0.0
    %889 = vmatprep.subr.mxu0 0.0
    %890 = vmatpush1.msra.mxu0 0.0
    %891 = vmatprep.subr.mxu0 0.0
    %892 = vmatpush1.msra.mxu0 0.0
    %893 = vmatprep.subr.mxu0 0.0
    %894 = vmatpush1.msra.mxu0 0.0
    %895 = vmatprep.subr.mxu0 0.0
    %896 = vmatpush1.msra.mxu0 0.0
    %897 = vmatprep.subr.mxu0 0.0
    %898 = vmatpush1.msra.mxu0 0.0
    %899 = vmatprep.subr.mxu0 0.0
    %900 = vmatpush1.msra.mxu0 0.0
    %901 = vmatprep.subr.mxu0 0.0
    %902 = vmatpush1.msra.mxu0 0.0
    %903 = vmatprep.subr.mxu0 0.0
    %904 = vmatpush1.msra.mxu0 0.0
    %905 = vmatprep.subr.mxu0 0.0
    %906 = vmatpush1.msra.mxu0 0.0
    %907 = vmatprep.subr.mxu0 0.0
    %908 = vmatpush1.msra.mxu0 0.0
    %909 = vmatprep.subr.mxu0 0.0
    %910 = vmatpush1.msra.mxu0 0.0
    %911 = vmatprep.subr.mxu0 0.0
    %912 = vmatpush1.msra.mxu0 0.0
    %913 = vmatprep.subr.mxu0 0.0
    %914 = vmatpush1.msra.mxu0 0.0
    %915 = vmatprep.subr.mxu0 0.0
    %916 = vmatpush1.msra.mxu0 0.0
    %917 = vmatprep.subr.mxu0 0.0
    %918 = vmatpush1.msra.mxu0 0.0
    %919 = vmatprep.subr.mxu0 0.0
    %920 = vmatpush1.msra.mxu0 0.0
    %921 = vmatprep.mubr.f32.mxu0 0.0
    %922 = vmatmul.mubr.f32.gmra.mrb[0].mxu0 %v855
    %v923 = vpop.f32.mrb[0].mxu0
    %v924 = vadd.f32 0.0, %v923
    %v925 = vpop.f32.mrb[0].mxu0
    %v926 = vadd.f32 0.0, %v925
    %927 = vdwg.mxu0
    %v930 = vrot.slane %v924, 6
    %v931 = vrot.slane %v926, 6
    %v934 = vadd.f32 %v215, %v930
    %v935 = vadd.f32 %v217, %v931
    %v936 = vxor.u32 %v934, 2147483648
    %v937 = vmul.f32 %v936, 1.442695
    %v938 = vpow.pop %v937
    %v939 = vadd.f32 %v938, 1.0
    %v940 = vrcp.pop %v939
    %v941 = vmul.f32 1.0, %v940
    %v942 = vtanh.pop %v935
    %v943 = vxor.u32 %v935, 2147483648
    %v944 = vmul.f32 %v943, 1.442695
    %v945 = vpow.pop %v944
    %v946 = vadd.f32 %v945, 1.0
    %v947 = vrcp.pop %v946
    %v948 = vmul.f32 1.0, %v947
    %v950 = vrot.slane %v849, 6
    %v952 = vmul.f32 %v941, %v950
    %v953 = vmul.f32 %v941, %v942
    %955 = vrot.lane.b32.xlu0 %v953, 64
    %v956 = vpop.permute.xlu0 %955
    %v958 = vadd.f32 %v952, %v956
    %v959 = vtanh.pop %v958
    %v960 = vmul.f32 %v948, %v959
    %v962 = vrot.slane %v960, 2
    %963 = vrot.lane.b32.xlu0 %v962, 64
    %v964 = vpop.permute.xlu0 %963
    %v965 = vsel %vm316, %v964, 0
    %967 = vmatprep.subr.mxu0 %v70
    %968 = vmatpush1.msra.mxu0 %v69
    %969 = vmatprep.subr.mxu0 %v72
    %970 = vmatpush1.msra.mxu0 %v71
    %971 = vmatprep.subr.mxu0 %v74
    %972 = vmatpush1.msra.mxu0 %v73
    %973 = vmatprep.subr.mxu0 %v76
    %974 = vmatpush1.msra.mxu0 %v75
    %975 = vmatprep.subr.mxu0 %v78
    %976 = vmatpush1.msra.mxu0 %v77
    %977 = vmatprep.subr.mxu0 %v80
    %978 = vmatpush1.msra.mxu0 %v79
    %979 = vmatprep.subr.mxu0 %v82
    %980 = vmatpush1.msra.mxu0 %v81
    %981 = vmatprep.subr.mxu0 %v84
    %982 = vmatpush1.msra.mxu0 %v83
    %983 = vmatprep.subr.mxu0 0.0
    %984 = vmatpush1.msra.mxu0 0.0
    %985 = vmatprep.subr.mxu0 0.0
    %986 = vmatpush1.msra.mxu0 0.0
    %987 = vmatprep.subr.mxu0 0.0
    %988 = vmatpush1.msra.mxu0 0.0
    %989 = vmatprep.subr.mxu0 0.0
    %990 = vmatpush1.msra.mxu0 0.0
    %991 = vmatprep.subr.mxu0 0.0
    %992 = vmatpush1.msra.mxu0 0.0
    %993 = vmatprep.subr.mxu0 0.0
    %994 = vmatpush1.msra.mxu0 0.0
    %995 = vmatprep.subr.mxu0 0.0
    %996 = vmatpush1.msra.mxu0 0.0
    %997 = vmatprep.subr.mxu0 0.0
    %998 = vmatpush1.msra.mxu0 0.0
    %999 = vmatprep.subr.mxu0 0.0
    %1000 = vmatpush1.msra.mxu0 0.0
    %1001 = vmatprep.subr.mxu0 0.0
    %1002 = vmatpush1.msra.mxu0 0.0
    %1003 = vmatprep.subr.mxu0 0.0
    %1004 = vmatpush1.msra.mxu0 0.0
    %1005 = vmatprep.subr.mxu0 0.0
    %1006 = vmatpush1.msra.mxu0 0.0
    %1007 = vmatprep.subr.mxu0 0.0
    %1008 = vmatpush1.msra.mxu0 0.0
    %1009 = vmatprep.subr.mxu0 0.0
    %1010 = vmatpush1.msra.mxu0 0.0
    %1011 = vmatprep.subr.mxu0 0.0
    %1012 = vmatpush1.msra.mxu0 0.0
    %1013 = vmatprep.subr.mxu0 0.0
    %1014 = vmatpush1.msra.mxu0 0.0
    %1015 = vmatprep.subr.mxu0 0.0
    %1016 = vmatpush1.msra.mxu0 0.0
    %1017 = vmatprep.subr.mxu0 0.0
    %1018 = vmatpush1.msra.mxu0 0.0
    %1019 = vmatprep.subr.mxu0 0.0
    %1020 = vmatpush1.msra.mxu0 0.0
    %1021 = vmatprep.subr.mxu0 0.0
    %1022 = vmatpush1.msra.mxu0 0.0
    %1023 = vmatprep.subr.mxu0 0.0
    %1024 = vmatpush1.msra.mxu0 0.0
    %1025 = vmatprep.subr.mxu0 0.0
    %1026 = vmatpush1.msra.mxu0 0.0
    %1027 = vmatprep.subr.mxu0 0.0
    %1028 = vmatpush1.msra.mxu0 0.0
    %1029 = vmatprep.subr.mxu0 0.0
    %1030 = vmatpush1.msra.mxu0 0.0
    %1031 = vmatprep.mubr.f32.mxu0 0.0
    %1032 = vmatmul.mubr.f32.gmra.mrb[0].mxu0 %v965
    %v1033 = vpop.f32.mrb[0].mxu0
    %v1034 = vadd.f32 0.0, %v1033
    %v1035 = vpop.f32.mrb[0].mxu0
    %v1036 = vadd.f32 0.0, %v1035
    %1037 = vdwg.mxu0
    %v1040 = vrot.slane %v1034, 4
    %v1041 = vrot.slane %v1036, 4
    %v1044 = vadd.f32 %v215, %v1040
    %v1045 = vadd.f32 %v217, %v1041
    %v1046 = vxor.u32 %v1044, 2147483648
    %v1047 = vmul.f32 %v1046, 1.442695
    %v1048 = vpow.pop %v1047
    %v1049 = vadd.f32 %v1048, 1.0
    %v1050 = vrcp.pop %v1049
    %v1051 = vmul.f32 1.0, %v1050
    %v1052 = vtanh.pop %v1045
    %v1053 = vxor.u32 %v1045, 2147483648
    %v1054 = vmul.f32 %v1053, 1.442695
    %v1055 = vpow.pop %v1054
    %v1056 = vadd.f32 %v1055, 1.0
    %v1057 = vrcp.pop %v1056
    %v1058 = vmul.f32 1.0, %v1057
    %v1060 = vrot.slane %v958, 6
    %v1062 = vmul.f32 %v1051, %v1060
    %v1063 = vmul.f32 %v1051, %v1052
    %1065 = vrot.lane.b32.xlu0 %v1063, 64
    %v1066 = vpop.permute.xlu0 %1065
    %v1068 = vadd.f32 %v1062, %v1066
    %v1069 = vtanh.pop %v1068
    %v1070 = vmul.f32 %v1058, %v1069
    %v1072 = vrot.slane %v1070, 4
    %1073 = vrot.lane.b32.xlu0 %v1072, 64
    %v1074 = vpop.permute.xlu0 %1073
    %v1075 = vsel %vm316, %v1074, 0
    %1077 = vmatprep.subr.mxu0 %v70
    %1078 = vmatpush1.msra.mxu0 %v69
    %1079 = vmatprep.subr.mxu0 %v72
    %1080 = vmatpush1.msra.mxu0 %v71
    %1081 = vmatprep.subr.mxu0 %v74
    %1082 = vmatpush1.msra.mxu0 %v73
    %1083 = vmatprep.subr.mxu0 %v76
    %1084 = vmatpush1.msra.mxu0 %v75
    %1085 = vmatprep.subr.mxu0 %v78
    %1086 = vmatpush1.msra.mxu0 %v77
    %1087 = vmatprep.subr.mxu0 %v80
    %1088 = vmatpush1.msra.mxu0 %v79
    %1089 = vmatprep.subr.mxu0 %v82
    %1090 = vmatpush1.msra.mxu0 %v81
    %1091 = vmatprep.subr.mxu0 %v84
    %1092 = vmatpush1.msra.mxu0 %v83
    %1093 = vmatprep.subr.mxu0 0.0
    %1094 = vmatpush1.msra.mxu0 0.0
    %1095 = vmatprep.subr.mxu0 0.0
    %1096 = vmatpush1.msra.mxu0 0.0
    %1097 = vmatprep.subr.mxu0 0.0
    %1098 = vmatpush1.msra.mxu0 0.0
    %1099 = vmatprep.subr.mxu0 0.0
    %1100 = vmatpush1.msra.mxu0 0.0
    %1101 = vmatprep.subr.mxu0 0.0
    %1102 = vmatpush1.msra.mxu0 0.0
    %1103 = vmatprep.subr.mxu0 0.0
    %1104 = vmatpush1.msra.mxu0 0.0
    %1105 = vmatprep.subr.mxu0 0.0
    %1106 = vmatpush1.msra.mxu0 0.0
    %1107 = vmatprep.subr.mxu0 0.0
    %1108 = vmatpush1.msra.mxu0 0.0
    %1109 = vmatprep.subr.mxu0 0.0
    %1110 = vmatpush1.msra.mxu0 0.0
    %1111 = vmatprep.subr.mxu0 0.0
    %1112 = vmatpush1.msra.mxu0 0.0
    %1113 = vmatprep.subr.mxu0 0.0
    %1114 = vmatpush1.msra.mxu0 0.0
    %1115 = vmatprep.subr.mxu0 0.0
    %1116 = vmatpush1.msra.mxu0 0.0
    %1117 = vmatprep.subr.mxu0 0.0
    %1118 = vmatpush1.msra.mxu0 0.0
    %1119 = vmatprep.subr.mxu0 0.0
    %1120 = vmatpush1.msra.mxu0 0.0
    %1121 = vmatprep.subr.mxu0 0.0
    %1122 = vmatpush1.msra.mxu0 0.0
    %1123 = vmatprep.subr.mxu0 0.0
    %1124 = vmatpush1.msra.mxu0 0.0
    %1125 = vmatprep.subr.mxu0 0.0
    %1126 = vmatpush1.msra.mxu0 0.0
    %1127 = vmatprep.subr.mxu0 0.0
    %1128 = vmatpush1.msra.mxu0 0.0
    %1129 = vmatprep.subr.mxu0 0.0
    %1130 = vmatpush1.msra.mxu0 0.0
    %1131 = vmatprep.subr.mxu0 0.0
    %1132 = vmatpush1.msra.mxu0 0.0
    %1133 = vmatprep.subr.mxu0 0.0
    %1134 = vmatpush1.msra.mxu0 0.0
    %1135 = vmatprep.subr.mxu0 0.0
    %1136 = vmatpush1.msra.mxu0 0.0
    %1137 = vmatprep.subr.mxu0 0.0
    %1138 = vmatpush1.msra.mxu0 0.0
    %1139 = vmatprep.subr.mxu0 0.0
    %1140 = vmatpush1.msra.mxu0 0.0
    %1141 = vmatprep.mubr.f32.mxu0 0.0
    %1142 = vmatmul.mubr.f32.gmra.mrb[0].mxu0 %v1075
    %v1143 = vpop.f32.mrb[0].mxu0
    %v1144 = vadd.f32 0.0, %v1143
    %v1145 = vpop.f32.mrb[0].mxu0
    %v1146 = vadd.f32 0.0, %v1145
    %1147 = vdwg.mxu0
    %v1150 = vrot.slane %v1144, 2
    %v1151 = vrot.slane %v1146, 2
    %v1154 = vadd.f32 %v215, %v1150
    %v1155 = vadd.f32 %v217, %v1151
    %v1156 = vxor.u32 %v1154, 2147483648
    %v1157 = vmul.f32 %v1156, 1.442695
    %v1158 = vpow.pop %v1157
    %v1159 = vadd.f32 %v1158, 1.0
    %v1160 = vrcp.pop %v1159
    %v1161 = vmul.f32 1.0, %v1160
    %v1162 = vtanh.pop %v1155
    %v1163 = vxor.u32 %v1155, 2147483648
    %v1164 = vmul.f32 %v1163, 1.442695
    %v1165 = vpow.pop %v1164
    %v1166 = vadd.f32 %v1165, 1.0
    %v1167 = vrcp.pop %v1166
    %v1168 = vmul.f32 1.0, %v1167
    %v1170 = vrot.slane %v1068, 6
    %v1172 = vmul.f32 %v1161, %v1170
    %v1173 = vmul.f32 %v1161, %v1162
    %1175 = vrot.lane.b32.xlu0 %v1173, 64
    %v1176 = vpop.permute.xlu0 %1175
    %v1178 = vadd.f32 %v1172, %v1176
    %v1179 = vtanh.pop %v1178
    %v1180 = vmul.f32 %v1168, %v1179
    %v1182 = vrot.slane %v56, 2
    %1183 = vrot.lane.b32.xlu0 %v1182, 64
    %v1184 = vpop.permute.xlu0 %1183
    %v1186 = vadd.f32 %v1178, %v1184
    %v1188 = vsel %vm316, %v60, 0
    %1190 = vmatprep.subr.mxu0 %v96
    %1191 = vmatpush1.msra.mxu0 %v95
    %1192 = vmatprep.subr.mxu0 %v98
    %1193 = vmatpush1.msra.mxu0 %v97
    %1194 = vmatprep.subr.mxu0 %v100
    %1195 = vmatpush1.msra.mxu0 %v99
    %1196 = vmatprep.subr.mxu0 %v102
    %1197 = vmatpush1.msra.mxu0 %v101
    %1198 = vmatprep.subr.mxu0 %v104
    %1199 = vmatpush1.msra.mxu0 %v103
    %1200 = vmatprep.subr.mxu0 %v106
    %1201 = vmatpush1.msra.mxu0 %v105
    %1202 = vmatprep.subr.mxu0 %v108
    %1203 = vmatpush1.msra.mxu0 %v107
    %1204 = vmatprep.subr.mxu0 %v110
    %1205 = vmatpush1.msra.mxu0 %v109
    %1206 = vmatprep.subr.mxu0 0.0
    %1207 = vmatpush1.msra.mxu0 0.0
    %1208 = vmatprep.subr.mxu0 0.0
    %1209 = vmatpush1.msra.mxu0 0.0
    %1210 = vmatprep.subr.mxu0 0.0
    %1211 = vmatpush1.msra.mxu0 0.0
    %1212 = vmatprep.subr.mxu0 0.0
    %1213 = vmatpush1.msra.mxu0 0.0
    %1214 = vmatprep.subr.mxu0 0.0
    %1215 = vmatpush1.msra.mxu0 0.0
    %1216 = vmatprep.subr.mxu0 0.0
    %1217 = vmatpush1.msra.mxu0 0.0
    %1218 = vmatprep.subr.mxu0 0.0
    %1219 = vmatpush1.msra.mxu0 0.0
    %1220 = vmatprep.subr.mxu0 0.0
    %1221 = vmatpush1.msra.mxu0 0.0
    %1222 = vmatprep.subr.mxu0 0.0
    %1223 = vmatpush1.msra.mxu0 0.0
    %1224 = vmatprep.subr.mxu0 0.0
    %1225 = vmatpush1.msra.mxu0 0.0
    %1226 = vmatprep.subr.mxu0 0.0
    %1227 = vmatpush1.msra.mxu0 0.0
    %1228 = vmatprep.subr.mxu0 0.0
    %1229 = vmatpush1.msra.mxu0 0.0
    %1230 = vmatprep.subr.mxu0 0.0
    %1231 = vmatpush1.msra.mxu0 0.0
    %1232 = vmatprep.subr.mxu0 0.0
    %1233 = vmatpush1.msra.mxu0 0.0
    %1234 = vmatprep.subr.mxu0 0.0
    %1235 = vmatpush1.msra.mxu0 0.0
    %1236 = vmatprep.subr.mxu0 0.0
    %1237 = vmatpush1.msra.mxu0 0.0
    %1238 = vmatprep.subr.mxu0 0.0
    %1239 = vmatpush1.msra.mxu0 0.0
    %1240 = vmatprep.subr.mxu0 0.0
    %1241 = vmatpush1.msra.mxu0 0.0
    %1242 = vmatprep.subr.mxu0 0.0
    %1243 = vmatpush1.msra.mxu0 0.0
    %1244 = vmatprep.subr.mxu0 0.0
    %1245 = vmatpush1.msra.mxu0 0.0
    %1246 = vmatprep.subr.mxu0 0.0
    %1247 = vmatpush1.msra.mxu0 0.0
    %1248 = vmatprep.subr.mxu0 0.0
    %1249 = vmatpush1.msra.mxu0 0.0
    %1250 = vmatprep.subr.mxu0 0.0
    %1251 = vmatpush1.msra.mxu0 0.0
    %1252 = vmatprep.subr.mxu0 0.0
    %1253 = vmatpush1.msra.mxu0 0.0
    %1254 = vmatprep.mubr.f32.mxu0 0.0
    %1255 = vmatmul.mubr.f32.gmra.mrb[0].mxu0 %v1188
    %v1256 = vpop.f32.mrb[0].mxu0
    %v1257 = vadd.f32 0.0, %v1256
    %v1258 = vpop.f32.mrb[0].mxu0
    %v1259 = vadd.f32 0.0, %v1258
    %1260 = vdwg.mxu0
    %v1261 = vadd.f32 %v305, %v1257
    %v1262 = vadd.f32 %v307, %v1259
    %v1263 = vxor.u32 %v1261, 2147483648
    %v1264 = vmul.f32 %v1263, 1.442695
    %v1265 = vpow.pop %v1264
    %v1266 = vadd.f32 %v1265, 1.0
    %v1267 = vrcp.pop %v1266
    %v1268 = vmul.f32 1.0, %v1267
    %v1269 = vtanh.pop %v1262
    %v1270 = vxor.u32 %v1262, 2147483648
    %v1271 = vmul.f32 %v1270, 1.442695
    %v1272 = vpow.pop %v1271
    %v1273 = vadd.f32 %v1272, 1.0
    %v1274 = vrcp.pop %v1273
    %v1275 = vmul.f32 1.0, %v1274
    %v1277 = vrot.slane %v1186, 6
    %v1279 = vmul.f32 %v1268, %v1277
    %v1280 = vmul.f32 %v1268, %v1269
    %1282 = vrot.lane.b32.xlu0 %v1280, 64
    %v1283 = vpop.permute.xlu0 %1282
    %v1285 = vadd.f32 %v1279, %v1283
    %v1286 = vtanh.pop %v1285
    %v1287 = vmul.f32 %v1275, %v1286
    %1289 = vrot.lane.b32.xlu0 %v1287, 64
    %v1290 = vpop.permute.xlu0 %1289
    %v1291 = vsel %vm316, %v1290, 0
    %1293 = vmatprep.subr.mxu0 %v96
    %1294 = vmatpush1.msra.mxu0 %v95
    %1295 = vmatprep.subr.mxu0 %v98
    %1296 = vmatpush1.msra.mxu0 %v97
    %1297 = vmatprep.subr.mxu0 %v100
    %1298 = vmatpush1.msra.mxu0 %v99
    %1299 = vmatprep.subr.mxu0 %v102
    %1300 = vmatpush1.msra.mxu0 %v101
    %1301 = vmatprep.subr.mxu0 %v104
    %1302 = vmatpush1.msra.mxu0 %v103
    %1303 = vmatprep.subr.mxu0 %v106
    %1304 = vmatpush1.msra.mxu0 %v105
    %1305 = vmatprep.subr.mxu0 %v108
    %1306 = vmatpush1.msra.mxu0 %v107
    %1307 = vmatprep.subr.mxu0 %v110
    %1308 = vmatpush1.msra.mxu0 %v109
    %1309 = vmatprep.subr.mxu0 0.0
    %1310 = vmatpush1.msra.mxu0 0.0
    %1311 = vmatprep.subr.mxu0 0.0
    %1312 = vmatpush1.msra.mxu0 0.0
    %1313 = vmatprep.subr.mxu0 0.0
    %1314 = vmatpush1.msra.mxu0 0.0
    %1315 = vmatprep.subr.mxu0 0.0
    %1316 = vmatpush1.msra.mxu0 0.0
    %1317 = vmatprep.subr.mxu0 0.0
    %1318 = vmatpush1.msra.mxu0 0.0
    %1319 = vmatprep.subr.mxu0 0.0
    %1320 = vmatpush1.msra.mxu0 0.0
    %1321 = vmatprep.subr.mxu0 0.0
    %1322 = vmatpush1.msra.mxu0 0.0
    %1323 = vmatprep.subr.mxu0 0.0
    %1324 = vmatpush1.msra.mxu0 0.0
    %1325 = vmatprep.subr.mxu0 0.0
    %1326 = vmatpush1.msra.mxu0 0.0
    %1327 = vmatprep.subr.mxu0 0.0
    %1328 = vmatpush1.msra.mxu0 0.0
    %1329 = vmatprep.subr.mxu0 0.0
    %1330 = vmatpush1.msra.mxu0 0.0
    %1331 = vmatprep.subr.mxu0 0.0
    %1332 = vmatpush1.msra.mxu0 0.0
    %1333 = vmatprep.subr.mxu0 0.0
    %1334 = vmatpush1.msra.mxu0 0.0
    %1335 = vmatprep.subr.mxu0 0.0
    %1336 = vmatpush1.msra.mxu0 0.0
    %1337 = vmatprep.subr.mxu0 0.0
    %1338 = vmatpush1.msra.mxu0 0.0
    %1339 = vmatprep.subr.mxu0 0.0
    %1340 = vmatpush1.msra.mxu0 0.0
    %1341 = vmatprep.subr.mxu0 0.0
    %1342 = vmatpush1.msra.mxu0 0.0
    %1343 = vmatprep.subr.mxu0 0.0
    %1344 = vmatpush1.msra.mxu0 0.0
    %1345 = vmatprep.subr.mxu0 0.0
    %1346 = vmatpush1.msra.mxu0 0.0
    %1347 = vmatprep.subr.mxu0 0.0
    %1348 = vmatpush1.msra.mxu0 0.0
    %1349 = vmatprep.subr.mxu0 0.0
    %1350 = vmatpush1.msra.mxu0 0.0
    %1351 = vmatprep.subr.mxu0 0.0
    %1352 = vmatpush1.msra.mxu0 0.0
    %1353 = vmatprep.subr.mxu0 0.0
    %1354 = vmatpush1.msra.mxu0 0.0
    %1355 = vmatprep.subr.mxu0 0.0
    %1356 = vmatpush1.msra.mxu0 0.0
    %1357 = vmatprep.mubr.f32.mxu0 0.0
    %1358 = vmatmul.mubr.f32.gmra.mrb[0].mxu0 %v1291
    %v1359 = vpop.f32.mrb[0].mxu0
    %v1360 = vadd.f32 0.0, %v1359
    %v1361 = vpop.f32.mrb[0].mxu0
    %v1362 = vadd.f32 0.0, %v1361
    %1363 = vdwg.mxu0
    %v1366 = vrot.slane %v1360, 6
    %v1367 = vrot.slane %v1362, 6
    %v1370 = vadd.f32 %v305, %v1366
    %v1371 = vadd.f32 %v307, %v1367
    %v1372 = vxor.u32 %v1370, 2147483648
    %v1373 = vmul.f32 %v1372, 1.442695
    %v1374 = vpow.pop %v1373
    %v1375 = vadd.f32 %v1374, 1.0
    %v1376 = vrcp.pop %v1375
    %v1377 = vmul.f32 1.0, %v1376
    %v1378 = vtanh.pop %v1371
    %v1379 = vxor.u32 %v1371, 2147483648
    %v1380 = vmul.f32 %v1379, 1.442695
    %v1381 = vpow.pop %v1380
    %v1382 = vadd.f32 %v1381, 1.0
    %v1383 = vrcp.pop %v1382
    %v1384 = vmul.f32 1.0, %v1383
    %v1386 = vrot.slane %v1285, 6
    %v1388 = vmul.f32 %v1377, %v1386
    %v1389 = vmul.f32 %v1377, %v1378
    %1391 = vrot.lane.b32.xlu0 %v1389, 64
    %v1392 = vpop.permute.xlu0 %1391
    %v1394 = vadd.f32 %v1388, %v1392
    %v1395 = vtanh.pop %v1394
    %v1396 = vmul.f32 %v1384, %v1395
    %v1398 = vrot.slane %v1396, 2
    %1399 = vrot.lane.b32.xlu0 %v1398, 64
    %v1400 = vpop.permute.xlu0 %1399
    %v1401 = vsel %vm316, %v1400, 0
    %1403 = vmatprep.subr.mxu0 %v96
    %1404 = vmatpush1.msra.mxu0 %v95
    %1405 = vmatprep.subr.mxu0 %v98
    %1406 = vmatpush1.msra.mxu0 %v97
    %1407 = vmatprep.subr.mxu0 %v100
    %1408 = vmatpush1.msra.mxu0 %v99
    %1409 = vmatprep.subr.mxu0 %v102
    %1410 = vmatpush1.msra.mxu0 %v101
    %1411 = vmatprep.subr.mxu0 %v104
    %1412 = vmatpush1.msra.mxu0 %v103
    %1413 = vmatprep.subr.mxu0 %v106
    %1414 = vmatpush1.msra.mxu0 %v105
    %1415 = vmatprep.subr.mxu0 %v108
    %1416 = vmatpush1.msra.mxu0 %v107
    %1417 = vmatprep.subr.mxu0 %v110
    %1418 = vmatpush1.msra.mxu0 %v109
    %1419 = vmatprep.subr.mxu0 0.0
    %1420 = vmatpush1.msra.mxu0 0.0
    %1421 = vmatprep.subr.mxu0 0.0
    %1422 = vmatpush1.msra.mxu0 0.0
    %1423 = vmatprep.subr.mxu0 0.0
    %1424 = vmatpush1.msra.mxu0 0.0
    %1425 = vmatprep.subr.mxu0 0.0
    %1426 = vmatpush1.msra.mxu0 0.0
    %1427 = vmatprep.subr.mxu0 0.0
    %1428 = vmatpush1.msra.mxu0 0.0
    %1429 = vmatprep.subr.mxu0 0.0
    %1430 = vmatpush1.msra.mxu0 0.0
    %1431 = vmatprep.subr.mxu0 0.0
    %1432 = vmatpush1.msra.mxu0 0.0
    %1433 = vmatprep.subr.mxu0 0.0
    %1434 = vmatpush1.msra.mxu0 0.0
    %1435 = vmatprep.subr.mxu0 0.0
    %1436 = vmatpush1.msra.mxu0 0.0
    %1437 = vmatprep.subr.mxu0 0.0
    %1438 = vmatpush1.msra.mxu0 0.0
    %1439 = vmatprep.subr.mxu0 0.0
    %1440 = vmatpush1.msra.mxu0 0.0
    %1441 = vmatprep.subr.mxu0 0.0
    %1442 = vmatpush1.msra.mxu0 0.0
    %1443 = vmatprep.subr.mxu0 0.0
    %1444 = vmatpush1.msra.mxu0 0.0
    %1445 = vmatprep.subr.mxu0 0.0
    %1446 = vmatpush1.msra.mxu0 0.0
    %1447 = vmatprep.subr.mxu0 0.0
    %1448 = vmatpush1.msra.mxu0 0.0
    %1449 = vmatprep.subr.mxu0 0.0
    %1450 = vmatpush1.msra.mxu0 0.0
    %1451 = vmatprep.subr.mxu0 0.0
    %1452 = vmatpush1.msra.mxu0 0.0
    %1453 = vmatprep.subr.mxu0 0.0
    %1454 = vmatpush1.msra.mxu0 0.0
    %1455 = vmatprep.subr.mxu0 0.0
    %1456 = vmatpush1.msra.mxu0 0.0
    %1457 = vmatprep.subr.mxu0 0.0
    %1458 = vmatpush1.msra.mxu0 0.0
    %1459 = vmatprep.subr.mxu0 0.0
    %1460 = vmatpush1.msra.mxu0 0.0
    %1461 = vmatprep.subr.mxu0 0.0
    %1462 = vmatpush1.msra.mxu0 0.0
    %1463 = vmatprep.subr.mxu0 0.0
    %1464 = vmatpush1.msra.mxu0 0.0
    %1465 = vmatprep.subr.mxu0 0.0
    %1466 = vmatpush1.msra.mxu0 0.0
    %1467 = vmatprep.mubr.f32.mxu0 0.0
    %1468 = vmatmul.mubr.f32.gmra.mrb[0].mxu0 %v1401
    %v1469 = vpop.f32.mrb[0].mxu0
    %v1470 = vadd.f32 0.0, %v1469
    %v1471 = vpop.f32.mrb[0].mxu0
    %v1472 = vadd.f32 0.0, %v1471
    %1473 = vdwg.mxu0
    %v1476 = vrot.slane %v1470, 4
    %v1477 = vrot.slane %v1472, 4
    %v1480 = vadd.f32 %v305, %v1476
    %v1481 = vadd.f32 %v307, %v1477
    %v1482 = vxor.u32 %v1480, 2147483648
    %v1483 = vmul.f32 %v1482, 1.442695
    %v1484 = vpow.pop %v1483
    %v1485 = vadd.f32 %v1484, 1.0
    %v1486 = vrcp.pop %v1485
    %v1487 = vmul.f32 1.0, %v1486
    %v1488 = vtanh.pop %v1481
    %v1489 = vxor.u32 %v1481, 2147483648
    %v1490 = vmul.f32 %v1489, 1.442695
    %v1491 = vpow.pop %v1490
    %v1492 = vadd.f32 %v1491, 1.0
    %v1493 = vrcp.pop %v1492
    %v1494 = vmul.f32 1.0, %v1493
    %v1496 = vrot.slane %v1394, 6
    %v1498 = vmul.f32 %v1487, %v1496
    %v1499 = vmul.f32 %v1487, %v1488
    %1501 = vrot.lane.b32.xlu0 %v1499, 64
    %v1502 = vpop.permute.xlu0 %1501
    %v1504 = vadd.f32 %v1498, %v1502
    %v1505 = vtanh.pop %v1504
    %v1506 = vmul.f32 %v1494, %v1505
    %v1508 = vrot.slane %v1506, 4
    %1509 = vrot.lane.b32.xlu0 %v1508, 64
    %v1510 = vpop.permute.xlu0 %1509
    %v1511 = vsel %vm316, %v1510, 0
    %1513 = vmatprep.subr.mxu0 %v96
    %1514 = vmatpush1.msra.mxu0 %v95
    %1515 = vmatprep.subr.mxu0 %v98
    %1516 = vmatpush1.msra.mxu0 %v97
    %1517 = vmatprep.subr.mxu0 %v100
    %1518 = vmatpush1.msra.mxu0 %v99
    %1519 = vmatprep.subr.mxu0 %v102
    %1520 = vmatpush1.msra.mxu0 %v101
    %1521 = vmatprep.subr.mxu0 %v104
    %1522 = vmatpush1.msra.mxu0 %v103
    %1523 = vmatprep.subr.mxu0 %v106
    %1524 = vmatpush1.msra.mxu0 %v105
    %1525 = vmatprep.subr.mxu0 %v108
    %1526 = vmatpush1.msra.mxu0 %v107
    %1527 = vmatprep.subr.mxu0 %v110
    %1528 = vmatpush1.msra.mxu0 %v109
    %1529 = vmatprep.subr.mxu0 0.0
    %1530 = vmatpush1.msra.mxu0 0.0
    %1531 = vmatprep.subr.mxu0 0.0
    %1532 = vmatpush1.msra.mxu0 0.0
    %1533 = vmatprep.subr.mxu0 0.0
    %1534 = vmatpush1.msra.mxu0 0.0
    %1535 = vmatprep.subr.mxu0 0.0
    %1536 = vmatpush1.msra.mxu0 0.0
    %1537 = vmatprep.subr.mxu0 0.0
    %1538 = vmatpush1.msra.mxu0 0.0
    %1539 = vmatprep.subr.mxu0 0.0
    %1540 = vmatpush1.msra.mxu0 0.0
    %1541 = vmatprep.subr.mxu0 0.0
    %1542 = vmatpush1.msra.mxu0 0.0
    %1543 = vmatprep.subr.mxu0 0.0
    %1544 = vmatpush1.msra.mxu0 0.0
    %1545 = vmatprep.subr.mxu0 0.0
    %1546 = vmatpush1.msra.mxu0 0.0
    %1547 = vmatprep.subr.mxu0 0.0
    %1548 = vmatpush1.msra.mxu0 0.0
    %1549 = vmatprep.subr.mxu0 0.0
    %1550 = vmatpush1.msra.mxu0 0.0
    %1551 = vmatprep.subr.mxu0 0.0
    %1552 = vmatpush1.msra.mxu0 0.0
    %1553 = vmatprep.subr.mxu0 0.0
    %1554 = vmatpush1.msra.mxu0 0.0
    %1555 = vmatprep.subr.mxu0 0.0
    %1556 = vmatpush1.msra.mxu0 0.0
    %1557 = vmatprep.subr.mxu0 0.0
    %1558 = vmatpush1.msra.mxu0 0.0
    %1559 = vmatprep.subr.mxu0 0.0
    %1560 = vmatpush1.msra.mxu0 0.0
    %1561 = vmatprep.subr.mxu0 0.0
    %1562 = vmatpush1.msra.mxu0 0.0
    %1563 = vmatprep.subr.mxu0 0.0
    %1564 = vmatpush1.msra.mxu0 0.0
    %1565 = vmatprep.subr.mxu0 0.0
    %1566 = vmatpush1.msra.mxu0 0.0
    %1567 = vmatprep.subr.mxu0 0.0
    %1568 = vmatpush1.msra.mxu0 0.0
    %1569 = vmatprep.subr.mxu0 0.0
    %1570 = vmatpush1.msra.mxu0 0.0
    %1571 = vmatprep.subr.mxu0 0.0
    %1572 = vmatpush1.msra.mxu0 0.0
    %1573 = vmatprep.subr.mxu0 0.0
    %1574 = vmatpush1.msra.mxu0 0.0
    %1575 = vmatprep.subr.mxu0 0.0
    %1576 = vmatpush1.msra.mxu0 0.0
    %1577 = vmatprep.mubr.f32.mxu0 0.0
    %1578 = vmatmul.mubr.f32.gmra.mrb[0].mxu0 %v1511
    %v1579 = vpop.f32.mrb[0].mxu0
    %v1580 = vadd.f32 0.0, %v1579
    %v1581 = vpop.f32.mrb[0].mxu0
    %v1582 = vadd.f32 0.0, %v1581
    %1583 = vdwg.mxu0
    %v1586 = vrot.slane %v1580, 2
    %v1587 = vrot.slane %v1582, 2
    %v1590 = vadd.f32 %v305, %v1586
    %v1591 = vadd.f32 %v307, %v1587
    %v1592 = vxor.u32 %v1590, 2147483648
    %v1593 = vmul.f32 %v1592, 1.442695
    %v1594 = vpow.pop %v1593
    %v1595 = vadd.f32 %v1594, 1.0
    %v1596 = vrcp.pop %v1595
    %v1597 = vmul.f32 1.0, %v1596
    %v1598 = vtanh.pop %v1591
    %v1599 = vxor.u32 %v1591, 2147483648
    %v1600 = vmul.f32 %v1599, 1.442695
    %v1601 = vpow.pop %v1600
    %v1602 = vadd.f32 %v1601, 1.0
    %v1603 = vrcp.pop %v1602
    %v1604 = vmul.f32 1.0, %v1603
    %v1606 = vrot.slane %v1504, 6
    %v1608 = vmul.f32 %v1597, %v1606
    %v1609 = vmul.f32 %v1597, %v1598
    %1611 = vrot.lane.b32.xlu0 %v1609, 64
    %v1612 = vpop.permute.xlu0 %1611
    %v1614 = vadd.f32 %v1608, %v1612
    %v1615 = vtanh.pop %v1614
    %v1616 = vmul.f32 %v1604, %v1615
    %v1618 = vrot.slane %v1616, 6
    %1619 = vrot.lane.b32.xlu0 %v1618, 64
    %v1620 = vpop.permute.xlu0 %1619
    %v1621 = vsel %vm316, %v1620, 0
    %1623 = vmatprep.subr.mxu0 %v96
    %1624 = vmatpush1.msra.mxu0 %v95
    %1625 = vmatprep.subr.mxu0 %v98
    %1626 = vmatpush1.msra.mxu0 %v97
    %1627 = vmatprep.subr.mxu0 %v100
    %1628 = vmatpush1.msra.mxu0 %v99
    %1629 = vmatprep.subr.mxu0 %v102
    %1630 = vmatpush1.msra.mxu0 %v101
    %1631 = vmatprep.subr.mxu0 %v104
    %1632 = vmatpush1.msra.mxu0 %v103
    %1633 = vmatprep.subr.mxu0 %v106
    %1634 = vmatpush1.msra.mxu0 %v105
    %1635 = vmatprep.subr.mxu0 %v108
    %1636 = vmatpush1.msra.mxu0 %v107
    %1637 = vmatprep.subr.mxu0 %v110
    %1638 = vmatpush1.msra.mxu0 %v109
    %1639 = vmatprep.subr.mxu0 0.0
    %1640 = vmatpush1.msra.mxu0 0.0
    %1641 = vmatprep.subr.mxu0 0.0
    %1642 = vmatpush1.msra.mxu0 0.0
    %1643 = vmatprep.subr.mxu0 0.0
    %1644 = vmatpush1.msra.mxu0 0.0
    %1645 = vmatprep.subr.mxu0 0.0
    %1646 = vmatpush1.msra.mxu0 0.0
    %1647 = vmatprep.subr.mxu0 0.0
    %1648 = vmatpush1.msra.mxu0 0.0
    %1649 = vmatprep.subr.mxu0 0.0
    %1650 = vmatpush1.msra.mxu0 0.0
    %1651 = vmatprep.subr.mxu0 0.0
    %1652 = vmatpush1.msra.mxu0 0.0
    %1653 = vmatprep.subr.mxu0 0.0
    %1654 = vmatpush1.msra.mxu0 0.0
    %1655 = vmatprep.subr.mxu0 0.0
    %1656 = vmatpush1.msra.mxu0 0.0
    %1657 = vmatprep.subr.mxu0 0.0
    %1658 = vmatpush1.msra.mxu0 0.0
    %1659 = vmatprep.subr.mxu0 0.0
    %1660 = vmatpush1.msra.mxu0 0.0
    %1661 = vmatprep.subr.mxu0 0.0
    %1662 = vmatpush1.msra.mxu0 0.0
    %1663 = vmatprep.subr.mxu0 0.0
    %1664 = vmatpush1.msra.mxu0 0.0
    %1665 = vmatprep.subr.mxu0 0.0
    %1666 = vmatpush1.msra.mxu0 0.0
    %1667 = vmatprep.subr.mxu0 0.0
    %1668 = vmatpush1.msra.mxu0 0.0
    %1669 = vmatprep.subr.mxu0 0.0
    %1670 = vmatpush1.msra.mxu0 0.0
    %1671 = vmatprep.subr.mxu0 0.0
    %1672 = vmatpush1.msra.mxu0 0.0
    %1673 = vmatprep.subr.mxu0 0.0
    %1674 = vmatpush1.msra.mxu0 0.0
    %1675 = vmatprep.subr.mxu0 0.0
    %1676 = vmatpush1.msra.mxu0 0.0
    %1677 = vmatprep.subr.mxu0 0.0
    %1678 = vmatpush1.msra.mxu0 0.0
    %1679 = vmatprep.subr.mxu0 0.0
    %1680 = vmatpush1.msra.mxu0 0.0
    %1681 = vmatprep.subr.mxu0 0.0
    %1682 = vmatpush1.msra.mxu0 0.0
    %1683 = vmatprep.subr.mxu0 0.0
    %1684 = vmatpush1.msra.mxu0 0.0
    %1685 = vmatprep.subr.mxu0 0.0
    %1686 = vmatpush1.msra.mxu0 0.0
    %1687 = vmatprep.mubr.f32.mxu0 0.0
    %1688 = vmatmul.mubr.f32.gmra.mrb[0].mxu0 %v1621
    %v1689 = vpop.f32.mrb[0].mxu0
    %v1690 = vadd.f32 0.0, %v1689
    %v1691 = vpop.f32.mrb[0].mxu0
    %v1692 = vadd.f32 0.0, %v1691
    %1693 = vdwg.mxu0
    %v1694 = vadd.f32 %v311, %v1690
    %v1695 = vadd.f32 %v313, %v1692
    %v1696 = vxor.u32 %v1694, 2147483648
    %v1697 = vmul.f32 %v1696, 1.442695
    %v1698 = vpow.pop %v1697
    %v1699 = vadd.f32 %v1698, 1.0
    %v1700 = vrcp.pop %v1699
    %v1701 = vmul.f32 1.0, %v1700
    %v1702 = vtanh.pop %v1695
    %v1703 = vxor.u32 %v1695, 2147483648
    %v1704 = vmul.f32 %v1703, 1.442695
    %v1705 = vpow.pop %v1704
    %v1706 = vadd.f32 %v1705, 1.0
    %v1707 = vrcp.pop %v1706
    %v1708 = vmul.f32 1.0, %v1707
    %v1710 = vrot.slane %v1614, 6
    %v1712 = vmul.f32 %v1701, %v1710
    %v1713 = vmul.f32 %v1701, %v1702
    %1715 = vrot.lane.b32.xlu0 %v1713, 64
    %v1716 = vpop.permute.xlu0 %1715
    %v1718 = vadd.f32 %v1712, %v1716
    %v1719 = vtanh.pop %v1718
    %v1720 = vmul.f32 %v1708, %v1719
    %1722 = vrot.lane.b32.xlu0 %v1720, 64
    %v1723 = vpop.permute.xlu0 %1722
    %v1724 = vsel %vm316, %v1723, 0
    %1726 = vmatprep.subr.mxu0 %v96
    %1727 = vmatpush1.msra.mxu0 %v95
    %1728 = vmatprep.subr.mxu0 %v98
    %1729 = vmatpush1.msra.mxu0 %v97
    %1730 = vmatprep.subr.mxu0 %v100
    %1731 = vmatpush1.msra.mxu0 %v99
    %1732 = vmatprep.subr.mxu0 %v102
    %1733 = vmatpush1.msra.mxu0 %v101
    %1734 = vmatprep.subr.mxu0 %v104
    %1735 = vmatpush1.msra.mxu0 %v103
    %1736 = vmatprep.subr.mxu0 %v106
    %1737 = vmatpush1.msra.mxu0 %v105
    %1738 = vmatprep.subr.mxu0 %v108
    %1739 = vmatpush1.msra.mxu0 %v107
    %1740 = vmatprep.subr.mxu0 %v110
    %1741 = vmatpush1.msra.mxu0 %v109
    %1742 = vmatprep.subr.mxu0 0.0
    %1743 = vmatpush1.msra.mxu0 0.0
    %1744 = vmatprep.subr.mxu0 0.0
    %1745 = vmatpush1.msra.mxu0 0.0
    %1746 = vmatprep.subr.mxu0 0.0
    %1747 = vmatpush1.msra.mxu0 0.0
    %1748 = vmatprep.subr.mxu0 0.0
    %1749 = vmatpush1.msra.mxu0 0.0
    %1750 = vmatprep.subr.mxu0 0.0
    %1751 = vmatpush1.msra.mxu0 0.0
    %1752 = vmatprep.subr.mxu0 0.0
    %1753 = vmatpush1.msra.mxu0 0.0
    %1754 = vmatprep.subr.mxu0 0.0
    %1755 = vmatpush1.msra.mxu0 0.0
    %1756 = vmatprep.subr.mxu0 0.0
    %1757 = vmatpush1.msra.mxu0 0.0
    %1758 = vmatprep.subr.mxu0 0.0
    %1759 = vmatpush1.msra.mxu0 0.0
    %1760 = vmatprep.subr.mxu0 0.0
    %1761 = vmatpush1.msra.mxu0 0.0
    %1762 = vmatprep.subr.mxu0 0.0
    %1763 = vmatpush1.msra.mxu0 0.0
    %1764 = vmatprep.subr.mxu0 0.0
    %1765 = vmatpush1.msra.mxu0 0.0
    %1766 = vmatprep.subr.mxu0 0.0
    %1767 = vmatpush1.msra.mxu0 0.0
    %1768 = vmatprep.subr.mxu0 0.0
    %1769 = vmatpush1.msra.mxu0 0.0
    %1770 = vmatprep.subr.mxu0 0.0
    %1771 = vmatpush1.msra.mxu0 0.0
    %1772 = vmatprep.subr.mxu0 0.0
    %1773 = vmatpush1.msra.mxu0 0.0
    %1774 = vmatprep.subr.mxu0 0.0
    %1775 = vmatpush1.msra.mxu0 0.0
    %1776 = vmatprep.subr.mxu0 0.0
    %1777 = vmatpush1.msra.mxu0 0.0
    %1778 = vmatprep.subr.mxu0 0.0
    %1779 = vmatpush1.msra.mxu0 0.0
    %1780 = vmatprep.subr.mxu0 0.0
    %1781 = vmatpush1.msra.mxu0 0.0
    %1782 = vmatprep.subr.mxu0 0.0
    %1783 = vmatpush1.msra.mxu0 0.0
    %1784 = vmatprep.subr.mxu0 0.0
    %1785 = vmatpush1.msra.mxu0 0.0
    %1786 = vmatprep.subr.mxu0 0.0
    %1787 = vmatpush1.msra.mxu0 0.0
    %1788 = vmatprep.subr.mxu0 0.0
    %1789 = vmatpush1.msra.mxu0 0.0
    %1790 = vmatprep.mubr.f32.mxu0 0.0
    %1791 = vmatmul.mubr.f32.gmra.mrb[0].mxu0 %v1724
    %v1792 = vpop.f32.mrb[0].mxu0
    %v1793 = vadd.f32 0.0, %v1792
    %v1794 = vpop.f32.mrb[0].mxu0
    %v1795 = vadd.f32 0.0, %v1794
    %1796 = vdwg.mxu0
    %v1799 = vrot.slane %v1793, 6
    %v1800 = vrot.slane %v1795, 6
    %v1803 = vadd.f32 %v311, %v1799
    %v1804 = vadd.f32 %v313, %v1800
    %v1805 = vxor.u32 %v1803, 2147483648
    %v1806 = vmul.f32 %v1805, 1.442695
    %v1807 = vpow.pop %v1806
    %v1808 = vadd.f32 %v1807, 1.0
    %v1809 = vrcp.pop %v1808
    %v1810 = vmul.f32 1.0, %v1809
    %v1811 = vtanh.pop %v1804
    %v1812 = vxor.u32 %v1804, 2147483648
    %v1813 = vmul.f32 %v1812, 1.442695
    %v1814 = vpow.pop %v1813
    %v1815 = vadd.f32 %v1814, 1.0
    %v1816 = vrcp.pop %v1815
    %v1817 = vmul.f32 1.0, %v1816
    %v1819 = vrot.slane %v1718, 6
    %v1821 = vmul.f32 %v1810, %v1819
    %v1822 = vmul.f32 %v1810, %v1811
    %1824 = vrot.lane.b32.xlu0 %v1822, 64
    %v1825 = vpop.permute.xlu0 %1824
    %v1827 = vadd.f32 %v1821, %v1825
    %v1828 = vtanh.pop %v1827
    %v1829 = vmul.f32 %v1817, %v1828
    %v1831 = vrot.slane %v1829, 2
    %1832 = vrot.lane.b32.xlu0 %v1831, 64
    %v1833 = vpop.permute.xlu0 %1832
    %v1834 = vsel %vm316, %v1833, 0
    %1836 = vmatprep.subr.mxu0 %v96
    %1837 = vmatpush1.msra.mxu0 %v95
    %1838 = vmatprep.subr.mxu0 %v98
    %1839 = vmatpush1.msra.mxu0 %v97
    %1840 = vmatprep.subr.mxu0 %v100
    %1841 = vmatpush1.msra.mxu0 %v99
    %1842 = vmatprep.subr.mxu0 %v102
    %1843 = vmatpush1.msra.mxu0 %v101
    %1844 = vmatprep.subr.mxu0 %v104
    %1845 = vmatpush1.msra.mxu0 %v103
    %1846 = vmatprep.subr.mxu0 %v106
    %1847 = vmatpush1.msra.mxu0 %v105
    %1848 = vmatprep.subr.mxu0 %v108
    %1849 = vmatpush1.msra.mxu0 %v107
    %1850 = vmatprep.subr.mxu0 %v110
    %1851 = vmatpush1.msra.mxu0 %v109
    %1852 = vmatprep.subr.mxu0 0.0
    %1853 = vmatpush1.msra.mxu0 0.0
    %1854 = vmatprep.subr.mxu0 0.0
    %1855 = vmatpush1.msra.mxu0 0.0
    %1856 = vmatprep.subr.mxu0 0.0
    %1857 = vmatpush1.msra.mxu0 0.0
    %1858 = vmatprep.subr.mxu0 0.0
    %1859 = vmatpush1.msra.mxu0 0.0
    %1860 = vmatprep.subr.mxu0 0.0
    %1861 = vmatpush1.msra.mxu0 0.0
    %1862 = vmatprep.subr.mxu0 0.0
    %1863 = vmatpush1.msra.mxu0 0.0
    %1864 = vmatprep.subr.mxu0 0.0
    %1865 = vmatpush1.msra.mxu0 0.0
    %1866 = vmatprep.subr.mxu0 0.0
    %1867 = vmatpush1.msra.mxu0 0.0
    %1868 = vmatprep.subr.mxu0 0.0
    %1869 = vmatpush1.msra.mxu0 0.0
    %1870 = vmatprep.subr.mxu0 0.0
    %1871 = vmatpush1.msra.mxu0 0.0
    %1872 = vmatprep.subr.mxu0 0.0
    %1873 = vmatpush1.msra.mxu0 0.0
    %1874 = vmatprep.subr.mxu0 0.0
    %1875 = vmatpush1.msra.mxu0 0.0
    %1876 = vmatprep.subr.mxu0 0.0
    %1877 = vmatpush1.msra.mxu0 0.0
    %1878 = vmatprep.subr.mxu0 0.0
    %1879 = vmatpush1.msra.mxu0 0.0
    %1880 = vmatprep.subr.mxu0 0.0
    %1881 = vmatpush1.msra.mxu0 0.0
    %1882 = vmatprep.subr.mxu0 0.0
    %1883 = vmatpush1.msra.mxu0 0.0
    %1884 = vmatprep.subr.mxu0 0.0
    %1885 = vmatpush1.msra.mxu0 0.0
    %1886 = vmatprep.subr.mxu0 0.0
    %1887 = vmatpush1.msra.mxu0 0.0
    %1888 = vmatprep.subr.mxu0 0.0
    %1889 = vmatpush1.msra.mxu0 0.0
    %1890 = vmatprep.subr.mxu0 0.0
    %1891 = vmatpush1.msra.mxu0 0.0
    %1892 = vmatprep.subr.mxu0 0.0
    %1893 = vmatpush1.msra.mxu0 0.0
    %1894 = vmatprep.subr.mxu0 0.0
    %1895 = vmatpush1.msra.mxu0 0.0
    %1896 = vmatprep.subr.mxu0 0.0
    %1897 = vmatpush1.msra.mxu0 0.0
    %1898 = vmatprep.subr.mxu0 0.0
    %1899 = vmatpush1.msra.mxu0 0.0
    %1900 = vmatprep.mubr.f32.mxu0 0.0
    %1901 = vmatmul.mubr.f32.gmra.mrb[0].mxu0 %v1834
    %v1902 = vpop.f32.mrb[0].mxu0
    %v1903 = vadd.f32 0.0, %v1902
    %v1904 = vpop.f32.mrb[0].mxu0
    %v1905 = vadd.f32 0.0, %v1904
    %1906 = vdwg.mxu0
    %v1909 = vrot.slane %v1903, 4
    %v1910 = vrot.slane %v1905, 4
    %v1913 = vadd.f32 %v311, %v1909
    %v1914 = vadd.f32 %v313, %v1910
    %v1915 = vxor.u32 %v1913, 2147483648
    %v1916 = vmul.f32 %v1915, 1.442695
    %v1917 = vpow.pop %v1916
    %v1918 = vadd.f32 %v1917, 1.0
    %v1919 = vrcp.pop %v1918
    %v1920 = vmul.f32 1.0, %v1919
    %v1921 = vtanh.pop %v1914
    %v1922 = vxor.u32 %v1914, 2147483648
    %v1923 = vmul.f32 %v1922, 1.442695
    %v1924 = vpow.pop %v1923
    %v1925 = vadd.f32 %v1924, 1.0
    %v1926 = vrcp.pop %v1925
    %v1927 = vmul.f32 1.0, %v1926
    %v1929 = vrot.slane %v1827, 6
    %v1931 = vmul.f32 %v1920, %v1929
    %v1932 = vmul.f32 %v1920, %v1921
    %1934 = vrot.lane.b32.xlu0 %v1932, 64
    %v1935 = vpop.permute.xlu0 %1934
    %v1937 = vadd.f32 %v1931, %v1935
    %v1938 = vtanh.pop %v1937
    %v1939 = vmul.f32 %v1927, %v1938
    %v1941 = vrot.slane %v1939, 4
    %1942 = vrot.lane.b32.xlu0 %v1941, 64
    %v1943 = vpop.permute.xlu0 %1942
    %v1944 = vsel %vm316, %v1943, 0
    %1946 = vmatprep.subr.mxu0 %v96
    %1947 = vmatpush1.msra.mxu0 %v95
    %1948 = vmatprep.subr.mxu0 %v98
    %1949 = vmatpush1.msra.mxu0 %v97
    %1950 = vmatprep.subr.mxu0 %v100
    %1951 = vmatpush1.msra.mxu0 %v99
    %1952 = vmatprep.subr.mxu0 %v102
    %1953 = vmatpush1.msra.mxu0 %v101
    %1954 = vmatprep.subr.mxu0 %v104
    %1955 = vmatpush1.msra.mxu0 %v103
    %1956 = vmatprep.subr.mxu0 %v106
    %1957 = vmatpush1.msra.mxu0 %v105
    %1958 = vmatprep.subr.mxu0 %v108
    %1959 = vmatpush1.msra.mxu0 %v107
    %1960 = vmatprep.subr.mxu0 %v110
    %1961 = vmatpush1.msra.mxu0 %v109
    %1962 = vmatprep.subr.mxu0 0.0
    %1963 = vmatpush1.msra.mxu0 0.0
    %1964 = vmatprep.subr.mxu0 0.0
    %1965 = vmatpush1.msra.mxu0 0.0
    %1966 = vmatprep.subr.mxu0 0.0
    %1967 = vmatpush1.msra.mxu0 0.0
    %1968 = vmatprep.subr.mxu0 0.0
    %1969 = vmatpush1.msra.mxu0 0.0
    %1970 = vmatprep.subr.mxu0 0.0
    %1971 = vmatpush1.msra.mxu0 0.0
    %1972 = vmatprep.subr.mxu0 0.0
    %1973 = vmatpush1.msra.mxu0 0.0
    %1974 = vmatprep.subr.mxu0 0.0
    %1975 = vmatpush1.msra.mxu0 0.0
    %1976 = vmatprep.subr.mxu0 0.0
    %1977 = vmatpush1.msra.mxu0 0.0
    %1978 = vmatprep.subr.mxu0 0.0
    %1979 = vmatpush1.msra.mxu0 0.0
    %1980 = vmatprep.subr.mxu0 0.0
    %1981 = vmatpush1.msra.mxu0 0.0
    %1982 = vmatprep.subr.mxu0 0.0
    %1983 = vmatpush1.msra.mxu0 0.0
    %1984 = vmatprep.subr.mxu0 0.0
    %1985 = vmatpush1.msra.mxu0 0.0
    %1986 = vmatprep.subr.mxu0 0.0
    %1987 = vmatpush1.msra.mxu0 0.0
    %1988 = vmatprep.subr.mxu0 0.0
    %1989 = vmatpush1.msra.mxu0 0.0
    %1990 = vmatprep.subr.mxu0 0.0
    %1991 = vmatpush1.msra.mxu0 0.0
    %1992 = vmatprep.subr.mxu0 0.0
    %1993 = vmatpush1.msra.mxu0 0.0
    %1994 = vmatprep.subr.mxu0 0.0
    %1995 = vmatpush1.msra.mxu0 0.0
    %1996 = vmatprep.subr.mxu0 0.0
    %1997 = vmatpush1.msra.mxu0 0.0
    %1998 = vmatprep.subr.mxu0 0.0
    %1999 = vmatpush1.msra.mxu0 0.0
    %2000 = vmatprep.subr.mxu0 0.0
    %2001 = vmatpush1.msra.mxu0 0.0
    %2002 = vmatprep.subr.mxu0 0.0
    %2003 = vmatpush1.msra.mxu0 0.0
    %2004 = vmatprep.subr.mxu0 0.0
    %2005 = vmatpush1.msra.mxu0 0.0
    %2006 = vmatprep.subr.mxu0 0.0
    %2007 = vmatpush1.msra.mxu0 0.0
    %2008 = vmatprep.subr.mxu0 0.0
    %2009 = vmatpush1.msra.mxu0 0.0
    %2010 = vmatprep.mubr.f32.mxu0 0.0
    %2011 = vmatmul.mubr.f32.gmra.mrb[0].mxu0 %v1944
    %v2012 = vpop.f32.mrb[0].mxu0
    %v2013 = vadd.f32 0.0, %v2012
    %v2014 = vpop.f32.mrb[0].mxu0
    %v2015 = vadd.f32 0.0, %v2014
    %2016 = vdwg.mxu0
    %v2019 = vrot.slane %v2013, 2
    %v2020 = vrot.slane %v2015, 2
    %v2023 = vadd.f32 %v311, %v2019
    %v2024 = vadd.f32 %v313, %v2020
    %v2025 = vxor.u32 %v2023, 2147483648
    %v2026 = vmul.f32 %v2025, 1.442695
    %v2027 = vpow.pop %v2026
    %v2028 = vadd.f32 %v2027, 1.0
    %v2029 = vrcp.pop %v2028
    %v2030 = vmul.f32 1.0, %v2029
    %v2031 = vtanh.pop %v2024
    %v2032 = vxor.u32 %v2024, 2147483648
    %v2033 = vmul.f32 %v2032, 1.442695
    %v2034 = vpow.pop %v2033
    %v2035 = vadd.f32 %v2034, 1.0
    %v2036 = vrcp.pop %v2035
    %v2037 = vmul.f32 1.0, %v2036
    %v2039 = vrot.slane %v1937, 6
    %v2041 = vmul.f32 %v2030, %v2039
    %v2042 = vmul.f32 %v2030, %v2031
    %2044 = vrot.lane.b32.xlu0 %v2042, 64
    %v2045 = vpop.permute.xlu0 %2044
    %v2047 = vadd.f32 %v2041, %v2045
    %v2048 = vtanh.pop %v2047
    %v2049 = vmul.f32 %v2037, %v2048
    %v2050 = vadd.f32 %v418, %v1287
    %v2051 = vadd.f32 %v527, %v1396
    %v2052 = vadd.f32 %v637, %v1506
    %v2053 = vadd.f32 %v747, %v1616
    %v2054 = vadd.f32 %v851, %v1720
    %v2055 = vadd.f32 %v960, %v1829
    %v2056 = vadd.f32 %v1070, %v1939
    %v2057 = vadd.f32 %v1180, %v2049
    %v2059 = vrot.slane %v2050, 1
    %v2062 = vrot.slane %v2051, 2
    %v2065 = vrot.slane %v2052, 3
    %v2068 = vrot.slane %v2053, 4
    %v2071 = vrot.slane %v2054, 5
    %v2074 = vrot.slane %v2055, 6
    %v2077 = vrot.slane %v2056, 7
    %vm2079 = vcmask 1040384
    %v2080 = vsel %vm2079, %v2059, %v2062
    %vm2081 = vcmask 1041408
    %v2082 = vsel %vm2081, %v2080, %v2065
    %vm2083 = vcmask 1042432
    %v2084 = vsel %vm2083, %v2082, %v2068
    %vm2085 = vcmask 1043456
    %v2086 = vsel %vm2085, %v2084, %v2071
    %vm2087 = vcmask 1044480
    %v2088 = vsel %vm2087, %v2086, %v2074
    %vm2089 = vcmask 1045504
    %v2090 = vsel %vm2089, %v2088, %v2077
    %vm2091 = vcmask 1046528
    %v2092 = vsel %vm2091, %v2090, %v2057
    %v2093 = vmul.f32 %v2092, 0.5
    %v2094 = vlaneseq
    %v2095 = vshrl.u32 %v2094, 7
    %v2096 = vsub.s32 0, %v2095
    %v2097 = vrot.slane %v121, %v2096
    %2099 = vrot.lane.b32.xlu0 %v2093, 64
    %v2100 = vpop.permute.xlu0 %2099
    %v2101 = vsel %vm316, %v2100, 0
    %2103 = vmatprep.subr.mxu0 0.0
    %2104 = vmatpush1.msra.mxu0 %v113
    %2105 = vmatprep.subr.mxu0 0.0
    %2106 = vmatpush1.msra.mxu0 %v114
    %2107 = vmatprep.subr.mxu0 0.0
    %2108 = vmatpush1.msra.mxu0 %v115
    %2109 = vmatprep.subr.mxu0 0.0
    %2110 = vmatpush1.msra.mxu0 %v116
    %2111 = vmatprep.subr.mxu0 0.0
    %2112 = vmatpush1.msra.mxu0 %v117
    %2113 = vmatprep.subr.mxu0 0.0
    %2114 = vmatpush1.msra.mxu0 %v118
    %2115 = vmatprep.subr.mxu0 0.0
    %2116 = vmatpush1.msra.mxu0 %v119
    %2117 = vmatprep.subr.mxu0 0.0
    %2118 = vmatpush1.msra.mxu0 %v120
    %2119 = vmatprep.subr.mxu0 0.0
    %2120 = vmatpush1.msra.mxu0 0.0
    %2121 = vmatprep.subr.mxu0 0.0
    %2122 = vmatpush1.msra.mxu0 0.0
    %2123 = vmatprep.subr.mxu0 0.0
    %2124 = vmatpush1.msra.mxu0 0.0
    %2125 = vmatprep.subr.mxu0 0.0
    %2126 = vmatpush1.msra.mxu0 0.0
    %2127 = vmatprep.subr.mxu0 0.0
    %2128 = vmatpush1.msra.mxu0 0.0
    %2129 = vmatprep.subr.mxu0 0.0
    %2130 = vmatpush1.msra.mxu0 0.0
    %2131 = vmatprep.subr.mxu0 0.0
    %2132 = vmatpush1.msra.mxu0 0.0
    %2133 = vmatprep.subr.mxu0 0.0
    %2134 = vmatpush1.msra.mxu0 0.0
    %2135 = vmatprep.subr.mxu0 0.0
    %2136 = vmatpush1.msra.mxu0 0.0
    %2137 = vmatprep.subr.mxu0 0.0
    %2138 = vmatpush1.msra.mxu0 0.0
    %2139 = vmatprep.subr.mxu0 0.0
    %2140 = vmatpush1.msra.mxu0 0.0
    %2141 = vmatprep.subr.mxu0 0.0
    %2142 = vmatpush1.msra.mxu0 0.0
    %2143 = vmatprep.subr.mxu0 0.0
    %2144 = vmatpush1.msra.mxu0 0.0
    %2145 = vmatprep.subr.mxu0 0.0
    %2146 = vmatpush1.msra.mxu0 0.0
    %2147 = vmatprep.subr.mxu0 0.0
    %2148 = vmatpush1.msra.mxu0 0.0
    %2149 = vmatprep.subr.mxu0 0.0
    %2150 = vmatpush1.msra.mxu0 0.0
    %2151 = vmatprep.subr.mxu0 0.0
    %2152 = vmatpush1.msra.mxu0 0.0
    %2153 = vmatprep.subr.mxu0 0.0
    %2154 = vmatpush1.msra.mxu0 0.0
    %2155 = vmatprep.subr.mxu0 0.0
    %2156 = vmatpush1.msra.mxu0 0.0
    %2157 = vmatprep.subr.mxu0 0.0
    %2158 = vmatpush1.msra.mxu0 0.0
    %2159 = vmatprep.subr.mxu0 0.0
    %2160 = vmatpush1.msra.mxu0 0.0
    %2161 = vmatprep.subr.mxu0 0.0
    %2162 = vmatpush1.msra.mxu0 0.0
    %2163 = vmatprep.subr.mxu0 0.0
    %2164 = vmatpush1.msra.mxu0 0.0
    %2165 = vmatprep.subr.mxu0 0.0
    %2166 = vmatpush1.msra.mxu0 0.0
    %2167 = vmatprep.mubr.f32.mxu0 0.0
    %2168 = vmatmul.mubr.f32.gmra.mrb[0].mxu0 %v2101
    %v2169 = vpop.f32.mrb[0].mxu0
    %v2170 = vadd.f32 %v2097, %v2169
    %v2171 = vpop.f32.mrb[0].mxu0
    %2172 = vdwg.mxu0
    %vm2173 = vcmask 80896
    %2174 = vst.msk [vmem:[#allocation7] sm:$0xff] %vm2173, %v2170
    %2176 = vrot.lane.b32.xlu0 %v1178, 64
    %v2177 = vpop.permute.xlu0 %2176
    %vm2179 = vcmask 523270
    %2180 = vst.msk [vmem:[%s7 - $0x6] sm:$0xc0] %vm2179, %v2177
    %2182 = vrot.lane.b32.xlu0 %v2047, 64
    %v2183 = vpop.permute.xlu0 %2182
    %s2185 = scalar_lea.vmem %s7, 2
    %2186 = vst.msk [vmem:[%s2185 - $0x6] sm:$0xc0] %vm2179, %v2183
    %2188 = vrot.lane.b32.xlu0 %v1180, 64
    %v2189 = vpop.permute.xlu0 %2188
    %s2191 = scalar_lea.vmem %s7, 4
    %2192 = vst.msk [vmem:[%s2191 - $0x6] sm:$0xc0] %vm2179, %v2189
    %2194 = vrot.lane.b32.xlu0 %v2049, 64
    %v2195 = vpop.permute.xlu0 %2194
    %s2197 = scalar_lea.vmem %s7, 6
    %2198 = vst.msk [vmem:[%s2197 - $0x6] sm:$0xc0] %vm2179, %v2195
    // Predicated region
    $region34: #{model_forward.1} parent=1 // pred_check
      _
    $region35: #{model_forward.1} parent=1 // pred_check_branch
      %2200 = sbr.rel (0) target = $region37
    $region36: #{model_forward.1} parent=1 // pred_region
      %s2202 = ssub.s32 128, 128
      %2203 = vsyncadd [#allocation4], %s2202
      %s2205 = sshll.u32 [#allocation7], 4
      %s2206 = int_to_ptr.vmem [resolvable:$true] %s2205
      %2208 = dma.vmem_to_hbm [thread:$0]  %s2206, 128, %s6, [#allocation4]
    $region37: #{model_forward.1} parent=1 // pred_fallthru
      _
    // Predicated region
    $region38: #{model_forward.1} parent=1 // pred_check
      _
    $region39: #{model_forward.1} parent=1 // pred_check_branch
      %2210 = sbr.rel (0) target = $region41
    $region40: #{model_forward.1} parent=1 // pred_region
      _
    $region41: #{model_forward.1} parent=1 // pred_fallthru
      _
    // Predicated region
    $region42: #{model_forward.1} parent=1 // pred_check
      _
    $region43: #{model_forward.1} parent=1 // pred_check_branch
      %2212 = sbr.rel (0) target = $region45
    $region44: #{model_forward.1} parent=1 // pred_region
      %2213 = dma.done [#allocation4], 128
    $region45: #{model_forward.1} parent=1 // pred_fallthru
      _
    // Predicated region
    $region46: #{model_forward.1} parent=1 // pred_check
      _
    $region47: #{model_forward.1} parent=1 // pred_check_branch
      %2215 = sbr.rel (0) target = $region49
    $region48: #{model_forward.1} parent=1 // pred_region
      _
    $region49: #{model_forward.1} parent=1 // pred_fallthru
      _
    %2216 = vsyncpa [#allocation3], 1
    %2217 = vsyncpa [#allocation6], 1
    %2218 = vsyncpa [#allocation4], 1

</llo_original>
